<compile_context>
chip_gen: v7x
topology: tpu7x:2x2x1
jax: 0.10.0
libtpu: 0.0.40
codegen_flags: <defaults>
</compile_context>

<pallas_src>
import jax
import jax.numpy as jnp
from jax import lax
from jax.experimental import pallas as pl
from jax.experimental.pallas import tpu as pltpu

INPUT_DIM = 4
BIG_DIM = 32
HIDDEN_DIM = 2
BN_EPS = 1e-5

# 64-lane weight slab rows
W64_ENC_NODE, W64_HEAD, W64_DEC_NODE = range(3)
# 32-lane weight slab rows
W32_ENC2, W32_DEC2, W32_DEC3 = range(3)
# bias slab rows (every row padded to 64 lanes)
(B_GAMMA, B_BETA, B_ENC1, B_ENC2, B_HEAD, B_DEC1, B_DEC2, B_DEC3) = range(8)


# ------------------------------- kernel -------------------------------------
def edgenet_vae_kernel(x_ref, eps_ref, src_ref, dst_ref, dstT_ref,
                       w64_ref, w32_ref, b_ref, out_ref):
    G, N, FP = x_ref.shape                          # (4, 16, 32)
    GN = G * N

    def b32(i):                                     # [1, 32] bias row
        return b_ref[i:i + 1, :][:, :BIG_DIM]

    def b64(i):                                     # [1, 64] bias row
        return b_ref[i:i + 1, :]

    x3 = x_ref[...]                                 # [G, N, 32] (cols >= 4 are zero)
    eps = eps_ref[...].reshape(GN, FP)              # [GN, 32]  (cols >= 2 are zero)
    src = src_ref[...]                              # [GE, GN] block-diag one-hot (f32)
    dst = dst_ref[...]                              # [GE, GN]
    dstT = dstT_ref[...]                            # [GN, GE], rows pre-scaled by 1/deg

    # ---- BatchNorm1d (training-mode batch stats, per graph) ----
    mean = jnp.mean(x3, axis=1, keepdims=True)                       # [G,1,32]
    diff = x3 - mean
    var = jnp.mean(diff * diff, axis=1, keepdims=True)               # [G,1,32]
    scale = lax.rsqrt(var + BN_EPS) * b32(B_GAMMA)                   # [G,1,32]
    h = (diff * scale + b32(B_BETA)).reshape(GN, FP)                 # [GN, 32]

    def edge_conv_first(hn, w64_idx, b_idx):
        # EdgeConv message relu([x_i, x_j - x_i] @ W + b), re-associated:
        #   p = hn @ [Wa - Wb | Wb]  (node-side, one wide MXU push)
        #   m = relu(dst @ p_a + src @ p_b + b)
        p = jnp.dot(hn, w64_ref[w64_idx], preferred_element_type=jnp.float32)
        m = (jnp.dot(dst, p[:, :BIG_DIM], preferred_element_type=jnp.float32)
             + jnp.dot(src, p[:, BIG_DIM:], preferred_element_type=jnp.float32)
             + b32(b_idx))
        return jnp.maximum(m, 0.0)

    def dense32(m, w_idx, b_idx, relu=True):
        y = jnp.dot(m, w32_ref[w_idx],
                    preferred_element_type=jnp.float32) + b32(b_idx)
        return jnp.maximum(y, 0.0) if relu else y

    def aggregate(m):
        # mean aggregation onto target nodes (1/deg already folded into dstT)
        return jnp.dot(dstT, m, preferred_element_type=jnp.float32)

    # ---- encoder EdgeConv: Lin(2*4,32)+ReLU, Lin(32,32)+ReLU, mean aggr ----
    m = edge_conv_first(h, W64_ENC_NODE, B_ENC1)
    m = dense32(m, W32_ENC2, B_ENC2)
    h_enc = aggregate(m)                                             # [GN, 32]

    # ---- fused mu|logvar head + reparameterize ----
    head = (jnp.dot(h_enc, w64_ref[W64_HEAD],
                    preferred_element_type=jnp.float32) + b64(B_HEAD))  # [GN, 64]
    mu = head[:, :BIG_DIM]
    logvar = head[:, BIG_DIM:]
    z = mu + eps * jnp.exp(0.5 * logvar)            # padded lanes stay exactly zero

    # ---- decoder EdgeConv: Lin(2*2,32)+ReLU, Lin(32,32)+ReLU, Lin(32,4), aggr ----
    m = edge_conv_first(z, W64_DEC_NODE, B_DEC1)
    m = dense32(m, W32_DEC2, B_DEC2)
    m = dense32(m, W32_DEC3, B_DEC3, relu=False)
    x_dec = aggregate(m)                                             # [GN, 32]

    # lane-dense packed output: [x_dec(32) | mu(32) | logvar(32) | zeros(32)]
    packed = jnp.concatenate(
        [x_dec, head, jnp.zeros((GN, BIG_DIM), jnp.float32)], axis=-1)  # [GN, 128]
    out_ref[...] = packed.reshape(G, N, 4 * BIG_DIM).astype(out_ref.dtype)


# ------------------------------- wrapper -------------------------------------
def edgenet_vae_forward(x_pad, eps_pad, src_bd, dst_bd, dstT_bd,
                        w64, w32, bslab, graphs_per_step):
    B, N, FP = x_pad.shape
    G = graphs_per_step
    assert B % G == 0
    steps = B // G
    GE, GN = src_bd.shape
    OUT = 4 * BIG_DIM

    node_spec = pl.BlockSpec((G, N, FP), lambda b: (b, 0, 0))
    out_spec = pl.BlockSpec((G, N, OUT), lambda b: (b, 0, 0))

    def shared(shape):
        zeros = (0,) * len(shape)
        return pl.BlockSpec(shape, lambda b: zeros)   # grid-invariant block

    flops_step = 2 * (
        2 * GN * BIG_DIM * 2 * BIG_DIM      # node-side projections (enc + dec)
        + 4 * GE * GN * BIG_DIM             # gather matmuls (2 per EdgeConv)
        + 3 * GE * BIG_DIM * BIG_DIM        # enc2, dec2, dec3
        + 2 * GN * GE * BIG_DIM             # scatter/aggregate (enc + dec)
        + GN * BIG_DIM * 2 * BIG_DIM)       # fused mu|var head
    in_bytes = sum(int(a.size) * a.dtype.itemsize
                   for a in (x_pad, eps_pad, src_bd, dst_bd, dstT_bd,
                             w64, w32, bslab))
    out_bytes = B * N * OUT * 4
    cost = pl.CostEstimate(flops=steps * flops_step,
                           transcendentals=B * N * BIG_DIM,
                           bytes_accessed=in_bytes + out_bytes)

    return pl.pallas_call(
        edgenet_vae_kernel,
        out_shape=jax.ShapeDtypeStruct((B, N, OUT), jnp.float32),
        grid_spec=pltpu.PrefetchScalarGridSpec(
            num_scalar_prefetch=0,
            grid=(steps,),
            in_specs=[node_spec, node_spec,
                      shared(src_bd.shape), shared(dst_bd.shape),
                      shared(dstT_bd.shape), shared(w64.shape),
                      shared(w32.shape), shared(bslab.shape)],
            out_specs=out_spec),
        compiler_params=pltpu.CompilerParams(
            dimension_semantics=("parallel",)),
        cost_estimate=cost,
    )(x_pad, eps_pad, src_bd, dst_bd, dstT_bd, w64, w32, bslab)


# ---------------------------- parameter setup --------------------------------
def init_raw_params(key):
    def linear(k, fi, fo):
        kw, kb = jax.random.split(k)
        bound = 1.0 / (fi ** 0.5)
        w = jax.random.uniform(kw, (fi, fo), jnp.float32, -bound, bound)
        b = jax.random.uniform(kb, (fo,), jnp.float32, -bound, bound)
        return w, b

    keys = jax.random.split(key, 7)
    p = {'gamma': jnp.ones((INPUT_DIM,), jnp.float32),
         'beta': jnp.zeros((INPUT_DIM,), jnp.float32)}
    p['enc_w1'], p['enc_b1'] = linear(keys[0], 2 * INPUT_DIM, BIG_DIM)
    p['enc_w2'], p['enc_b2'] = linear(keys[1], BIG_DIM, BIG_DIM)
    p['w_mu'], p['b_mu'] = linear(keys[2], BIG_DIM, HIDDEN_DIM)
    p['w_var'], p['b_var'] = linear(keys[3], BIG_DIM, HIDDEN_DIM)
    p['dec_w1'], p['dec_b1'] = linear(keys[4], 2 * HIDDEN_DIM, BIG_DIM)
    p['dec_w2'], p['dec_b2'] = linear(keys[5], BIG_DIM, BIG_DIM)
    p['dec_w3'], p['dec_b3'] = linear(keys[6], BIG_DIM, INPUT_DIM)
    return p


def pack_params(p):
    def pad32(w):
        out = jnp.zeros((BIG_DIM, BIG_DIM), jnp.float32)
        return out.at[:w.shape[0], :w.shape[1]].set(w)

    def pad_b64(b, offset=0):
        out = jnp.zeros((2 * BIG_DIM,), jnp.float32)
        return out.at[offset:offset + b.shape[0]].set(b)

    # PyG EdgeConv first Linear: rows [:D] multiply x_i, rows [D:] multiply x_j - x_i.
    # Re-associate: x_i@Wa + (x_j-x_i)@Wb = x_i@(Wa-Wb) + x_j@Wb.
    enc_wa, enc_wb = p['enc_w1'][:INPUT_DIM], p['enc_w1'][INPUT_DIM:]
    dec_wa, dec_wb = p['dec_w1'][:HIDDEN_DIM], p['dec_w1'][HIDDEN_DIM:]

    w64 = jnp.stack([
        jnp.concatenate([pad32(enc_wa - enc_wb), pad32(enc_wb)], axis=1),  # W64_ENC_NODE
        jnp.concatenate([pad32(p['w_mu']), pad32(p['w_var'])], axis=1),    # W64_HEAD
        jnp.concatenate([pad32(dec_wa - dec_wb), pad32(dec_wb)], axis=1),  # W64_DEC_NODE
    ])
    w32 = jnp.stack([pad32(p['enc_w2']),     # W32_ENC2
                     pad32(p['dec_w2']),     # W32_DEC2
                     pad32(p['dec_w3'])])    # W32_DEC3
    bslab = jnp.stack([
        pad_b64(p['gamma']),
        pad_b64(p['beta']),
        pad_b64(p['enc_b1']),
        pad_b64(p['enc_b2']),
        pad_b64(p['b_mu']) + pad_b64(p['b_var'], offset=BIG_DIM),   # [b_mu | b_var]
        pad_b64(p['dec_b1']),
        pad_b64(p['dec_b2']),
        pad_b64(p['dec_b3']),
    ])
    return w64, w32, bslab


# --------------------------- pure-JAX reference ------------------------------
def reference_forward(x, eps, src_idx, dst_idx, p):
    def dense(h, w, b, relu=True):
        y = h @ w + b
        return jnp.maximum(y, 0.0) if relu else y

    n = x.shape[0]
    mean = jnp.mean(x, axis=0, keepdims=True)
    var = jnp.mean((x - mean) ** 2, axis=0, keepdims=True)
    h = (x - mean) / jnp.sqrt(var + BN_EPS) * p['gamma'] + p['beta']

    def edge_conv(h, layers):
        x_i = h[dst_idx]
        x_j = h[src_idx]
        m = jnp.concatenate([x_i, x_j - x_i], axis=-1)
        for (w, b, relu) in layers:
            m = dense(m, w, b, relu)
        summed = jax.ops.segment_sum(m, dst_idx, num_segments=n)
        cnt = jax.ops.segment_sum(jnp.ones_like(dst_idx, jnp.float32), dst_idx,
                                  num_segments=n)[:, None]
        return jnp.where(cnt > 0, summed / jnp.maximum(cnt, 1.0), 0.0)

    h = edge_conv(h, [(p['enc_w1'], p['enc_b1'], True),
                      (p['enc_w2'], p['enc_b2'], True)])
    mu = h @ p['w_mu'] + p['b_mu']
    logvar = h @ p['w_var'] + p['b_var']
    z = mu + eps * jnp.exp(0.5 * logvar)
    xo = edge_conv(z, [(p['dec_w1'], p['dec_b1'], True),
                       (p['dec_w2'], p['dec_b2'], True),
                       (p['dec_w3'], p['dec_b3'], False)])
    return xo, mu, logvar


# ------------------------------------ main ------------------------------------
if __name__ == "__main__":
    key = jax.random.PRNGKey(0)
    k_x, k_eps, k_p = jax.random.split(key, 3)

    B, N = 8, 16
    GRAPHS_PER_STEP = 4   # grid=(2,) "parallel": feeds both TCs on v7x; costs one
                          # extra ~0.35us step on single-TC v5e/v6e (negligible).

    # bidirectional ring graph shared across the batch -> E = 2 * N edges
    nodes = jnp.arange(N, dtype=jnp.int32)
    src_idx = jnp.concatenate([nodes, (nodes + 1) % N])    # edge_index[0] (source j)
    dst_idx = jnp.concatenate([(nodes + 1) % N, nodes])    # edge_index[1] (target i)
    E = int(src_idx.shape[0])

    x = jax.random.normal(k_x, (B, N, INPUT_DIM), jnp.float32)
    eps = jax.random.normal(k_eps, (B, N, HIDDEN_DIM), jnp.float32)

    # f32 one-hot gather/scatter matrices; fold 1/deg (mean aggr) into the scatter
    src_oh = jax.nn.one_hot(src_idx, N, dtype=jnp.float32)   # [E, N]
    dst_oh = jax.nn.one_hot(dst_idx, N, dtype=jnp.float32)   # [E, N]
    deg = jax.ops.segment_sum(jnp.ones((E,), jnp.float32), dst_idx, num_segments=N)
    inv_deg = jnp.where(deg > 0, 1.0 / jnp.maximum(deg, 1.0), 0.0)[:, None]
    dstT_scaled = dst_oh.T * inv_deg                          # [N, E], f32 (exact)

    # block-diagonal versions covering GRAPHS_PER_STEP graphs per grid step
    eye_g = jnp.eye(GRAPHS_PER_STEP, dtype=jnp.float32)
    src_bd = jnp.kron(eye_g, src_oh)          # [G*E, G*N]
    dst_bd = jnp.kron(eye_g, dst_oh)          # [G*E, G*N]
    dstT_bd = jnp.kron(eye_g, dstT_scaled)    # [G*N, G*E]

    raw = init_raw_params(k_p)
    w64, w32, bslab = pack_params(raw)

    # zero-pad node features / reparam noise to 32-lane slabs
    x_pad = jnp.zeros((B, N, BIG_DIM), jnp.float32).at[:, :, :INPUT_DIM].set(x)
    eps_pad = jnp.zeros((B, N, BIG_DIM), jnp.float32).at[:, :, :HIDDEN_DIM].set(eps)

    out = edgenet_vae_forward(x_pad, eps_pad, src_bd, dst_bd, dstT_bd,
                              w64, w32, bslab, GRAPHS_PER_STEP)
    out = jax.block_until_ready(out)

    # unpack the lane-dense output: [x_dec(32) | mu(32) | logvar(32) | zeros(32)]
    x_out = out[:, :, :INPUT_DIM]
    mu = out[:, :, BIG_DIM:BIG_DIM + HIDDEN_DIM]
    logvar = out[:, :, 2 * BIG_DIM:2 * BIG_DIM + HIDDEN_DIM]

    ref_fn = jax.vmap(lambda xb, eb: reference_forward(xb, eb, src_idx, dst_idx, raw))
    ref_x, ref_mu, ref_lv = ref_fn(x, eps)

    assert x_out.shape == (B, N, INPUT_DIM)
    assert jnp.allclose(x_out, ref_x, atol=1e-4, rtol=1e-4), "x mismatch vs reference"
    assert jnp.allclose(mu, ref_mu, atol=1e-4, rtol=1e-4), "mu mismatch vs reference"
    assert jnp.allclose(logvar, ref_lv, atol=1e-4, rtol=1e-4), "logvar mismatch vs reference"

    print("KERNEL_OK")
</pallas_src>

<mosaic_0001>
module attributes {stable_mosaic.version = 11 : i64} {
  func.func @edgenet_vae_kernel(%arg0: i32, %arg1: memref<4x16x32xf32, #tpu.memory_space<vmem>>, %arg2: memref<4x16x32xf32, #tpu.memory_space<vmem>>, %arg3: memref<128x64xf32, #tpu.memory_space<vmem>>, %arg4: memref<128x64xf32, #tpu.memory_space<vmem>>, %arg5: memref<64x128xf32, #tpu.memory_space<vmem>>, %arg6: memref<3x32x64xf32, #tpu.memory_space<vmem>>, %arg7: memref<3x32x32xf32, #tpu.memory_space<vmem>>, %arg8: memref<8x64xf32, #tpu.memory_space<vmem>>, %arg9: memref<4x16x128xf32, #tpu.memory_space<vmem>>) attributes {dimension_semantics = [#tpu.dimension_semantics<parallel>], iteration_bounds = array<i64: 2>, scalar_prefetch = 0 : i64, scratch_operands = 0 : i64, tpu.core_type = #tpu.core_type<tc>, window_params = [{transform_indices = @transform_0, window_bounds = array<i64: 4, 16, 32>}, {transform_indices = @transform_1, window_bounds = array<i64: 4, 16, 32>}, {pipeline_mode = #tpu.pipeline_mode<synchronous>, transform_indices = @transform_2, window_bounds = array<i64: 128, 64>}, {pipeline_mode = #tpu.pipeline_mode<synchronous>, transform_indices = @transform_3, window_bounds = array<i64: 128, 64>}, {pipeline_mode = #tpu.pipeline_mode<synchronous>, transform_indices = @transform_4, window_bounds = array<i64: 64, 128>}, {pipeline_mode = #tpu.pipeline_mode<synchronous>, transform_indices = @transform_5, window_bounds = array<i64: 3, 32, 64>}, {pipeline_mode = #tpu.pipeline_mode<synchronous>, transform_indices = @transform_6, window_bounds = array<i64: 3, 32, 32>}, {pipeline_mode = #tpu.pipeline_mode<synchronous>, transform_indices = @transform_7, window_bounds = array<i64: 8, 64>}, {transform_indices = @transform_8, window_bounds = array<i64: 4, 16, 128>}]} {
    %c0 = arith.constant 0 : index
    %c0_0 = arith.constant 0 : index
    %c0_1 = arith.constant 0 : index
    %0 = vector.load %arg1[%c0, %c0_0, %c0_1] : memref<4x16x32xf32, #tpu.memory_space<vmem>>, vector<4x16x32xf32>
    %c0_2 = arith.constant 0 : index
    %c0_3 = arith.constant 0 : index
    %c0_4 = arith.constant 0 : index
    %1 = vector.load %arg2[%c0_2, %c0_3, %c0_4] : memref<4x16x32xf32, #tpu.memory_space<vmem>>, vector<4x16x32xf32>
    %2 = vector.shape_cast %1 : vector<4x16x32xf32> to vector<64x32xf32>
    %c0_5 = arith.constant 0 : index
    %c0_6 = arith.constant 0 : index
    %3 = vector.load %arg3[%c0_5, %c0_6] : memref<128x64xf32, #tpu.memory_space<vmem>>, vector<128x64xf32>
    %c0_7 = arith.constant 0 : index
    %c0_8 = arith.constant 0 : index
    %4 = vector.load %arg4[%c0_7, %c0_8] : memref<128x64xf32, #tpu.memory_space<vmem>>, vector<128x64xf32>
    %c0_9 = arith.constant 0 : index
    %c0_10 = arith.constant 0 : index
    %5 = vector.load %arg5[%c0_9, %c0_10] : memref<64x128xf32, #tpu.memory_space<vmem>>, vector<64x128xf32>
    %cst = arith.constant dense<0.000000e+00> : vector<4x32xf32>
    %6 = vector.multi_reduction <add>, %0, %cst [1] : vector<4x16x32xf32> to vector<4x32xf32>
    %7 = vector.shape_cast %6 : vector<4x32xf32> to vector<4x1x32xf32>
    %cst_11 = arith.constant 1.600000e+01 : f32
    %8 = vector.broadcast %cst_11 : f32 to vector<4x1x32xf32>
    %9 = arith.divf %7, %8 : vector<4x1x32xf32>
    %10 = vector.broadcast %9 : vector<4x1x32xf32> to vector<4x16x32xf32>
    %11 = arith.subf %0, %10 : vector<4x16x32xf32>
    %12 = arith.mulf %11, %11 : vector<4x16x32xf32>
    %cst_12 = arith.constant dense<0.000000e+00> : vector<4x32xf32>
    %13 = vector.multi_reduction <add>, %12, %cst_12 [1] : vector<4x16x32xf32> to vector<4x32xf32>
    %14 = vector.shape_cast %13 : vector<4x32xf32> to vector<4x1x32xf32>
    %cst_13 = arith.constant 1.600000e+01 : f32
    %15 = vector.broadcast %cst_13 : f32 to vector<4x1x32xf32>
    %16 = arith.divf %14, %15 : vector<4x1x32xf32>
    %cst_14 = arith.constant 9.99999974E-6 : f32
    %17 = vector.broadcast %cst_14 : f32 to vector<4x1x32xf32>
    %18 = arith.addf %16, %17 : vector<4x1x32xf32>
    %19 = math.rsqrt %18 : vector<4x1x32xf32>
    %c0_15 = arith.constant 0 : index
    %c0_16 = arith.constant 0 : index
    %20 = vector.load %arg8[%c0_15, %c0_16] : memref<8x64xf32, #tpu.memory_space<vmem>>, vector<1x64xf32>
    %21 = vector.extract_strided_slice %20 {offsets = [0, 0], sizes = [1, 32], strides = [1, 1]} : vector<1x64xf32> to vector<1x32xf32>
    %22 = vector.shape_cast %21 : vector<1x32xf32> to vector<1x1x32xf32>
    %23 = vector.broadcast %22 : vector<1x1x32xf32> to vector<4x1x32xf32>
    %24 = arith.mulf %19, %23 : vector<4x1x32xf32>
    %25 = vector.broadcast %24 : vector<4x1x32xf32> to vector<4x16x32xf32>
    %26 = arith.mulf %11, %25 : vector<4x16x32xf32>
    %c1 = arith.constant 1 : index
    %c0_17 = arith.constant 0 : index
    %27 = vector.load %arg8[%c1, %c0_17] : memref<8x64xf32, #tpu.memory_space<vmem>>, vector<1x64xf32>
    %28 = vector.extract_strided_slice %27 {offsets = [0, 0], sizes = [1, 32], strides = [1, 1]} : vector<1x64xf32> to vector<1x32xf32>
    %29 = vector.shape_cast %28 : vector<1x32xf32> to vector<1x1x32xf32>
    %30 = vector.broadcast %29 : vector<1x1x32xf32> to vector<4x16x32xf32>
    %31 = arith.addf %26, %30 : vector<4x16x32xf32>
    %32 = vector.shape_cast %31 : vector<4x16x32xf32> to vector<64x32xf32>
    %c0_18 = arith.constant 0 : index
    %c0_19 = arith.constant 0 : index
    %c0_20 = arith.constant 0 : index
    %33 = vector.load %arg6[%c0_18, %c0_19, %c0_20] : memref<3x32x64xf32, #tpu.memory_space<vmem>>, vector<1x32x64xf32>
    %34 = vector.shape_cast %33 : vector<1x32x64xf32> to vector<32x64xf32>
    %cst_21 = arith.constant dense<0.000000e+00> : vector<64x64xf32>
    %35 = tpu.matmul %32, %34, %cst_21 {dimension_numbers = #tpu.dot_dimension_numbers<[1], [0], [0], [1], [0, 0, 1, 1], [], []>} : vector<64x32xf32>, vector<32x64xf32>, vector<64x64xf32> -> vector<64x64xf32>
    %36 = vector.extract_strided_slice %35 {offsets = [0, 0], sizes = [64, 32], strides = [1, 1]} : vector<64x64xf32> to vector<64x32xf32>
    %cst_22 = arith.constant dense<0.000000e+00> : vector<128x32xf32>
    %37 = tpu.matmul %4, %36, %cst_22 {dimension_numbers = #tpu.dot_dimension_numbers<[1], [0], [0], [1], [0, 0, 1, 1], [], []>} : vector<128x64xf32>, vector<64x32xf32>, vector<128x32xf32> -> vector<128x32xf32>
    %38 = vector.extract_strided_slice %35 {offsets = [0, 32], sizes = [64, 32], strides = [1, 1]} : vector<64x64xf32> to vector<64x32xf32>
    %cst_23 = arith.constant dense<0.000000e+00> : vector<128x32xf32>
    %39 = tpu.matmul %3, %38, %cst_23 {dimension_numbers = #tpu.dot_dimension_numbers<[1], [0], [0], [1], [0, 0, 1, 1], [], []>} : vector<128x64xf32>, vector<64x32xf32>, vector<128x32xf32> -> vector<128x32xf32>
    %40 = arith.addf %37, %39 : vector<128x32xf32>
    %c2 = arith.constant 2 : index
    %c0_24 = arith.constant 0 : index
    %41 = vector.load %arg8[%c2, %c0_24] : memref<8x64xf32, #tpu.memory_space<vmem>>, vector<1x64xf32>
    %42 = vector.extract_strided_slice %41 {offsets = [0, 0], sizes = [1, 32], strides = [1, 1]} : vector<1x64xf32> to vector<1x32xf32>
    %43 = vector.broadcast %42 : vector<1x32xf32> to vector<128x32xf32>
    %44 = arith.addf %40, %43 : vector<128x32xf32>
    %cst_25 = arith.constant 0.000000e+00 : f32
    %45 = vector.broadcast %cst_25 : f32 to vector<128x32xf32>
    %46 = arith.maximumf %44, %45 : vector<128x32xf32>
    %c0_26 = arith.constant 0 : index
    %c0_27 = arith.constant 0 : index
    %c0_28 = arith.constant 0 : index
    %47 = vector.load %arg7[%c0_26, %c0_27, %c0_28] : memref<3x32x32xf32, #tpu.memory_space<vmem>>, vector<1x32x32xf32>
    %48 = vector.shape_cast %47 : vector<1x32x32xf32> to vector<32x32xf32>
    %cst_29 = arith.constant dense<0.000000e+00> : vector<128x32xf32>
    %49 = tpu.matmul %46, %48, %cst_29 {dimension_numbers = #tpu.dot_dimension_numbers<[1], [0], [0], [1], [0, 0, 1, 1], [], []>} : vector<128x32xf32>, vector<32x32xf32>, vector<128x32xf32> -> vector<128x32xf32>
    %c3 = arith.constant 3 : index
    %c0_30 = arith.constant 0 : index
    %50 = vector.load %arg8[%c3, %c0_30] : memref<8x64xf32, #tpu.memory_space<vmem>>, vector<1x64xf32>
    %51 = vector.extract_strided_slice %50 {offsets = [0, 0], sizes = [1, 32], strides = [1, 1]} : vector<1x64xf32> to vector<1x32xf32>
    %52 = vector.broadcast %51 : vector<1x32xf32> to vector<128x32xf32>
    %53 = arith.addf %49, %52 : vector<128x32xf32>
    %cst_31 = arith.constant 0.000000e+00 : f32
    %54 = vector.broadcast %cst_31 : f32 to vector<128x32xf32>
    %55 = arith.maximumf %53, %54 : vector<128x32xf32>
    %cst_32 = arith.constant dense<0.000000e+00> : vector<64x32xf32>
    %56 = tpu.matmul %5, %55, %cst_32 {dimension_numbers = #tpu.dot_dimension_numbers<[1], [0], [0], [1], [0, 0, 1, 1], [], []>} : vector<64x128xf32>, vector<128x32xf32>, vector<64x32xf32> -> vector<64x32xf32>
    %c1_33 = arith.constant 1 : index
    %c0_34 = arith.constant 0 : index
    %c0_35 = arith.constant 0 : index
    %57 = vector.load %arg6[%c1_33, %c0_34, %c0_35] : memref<3x32x64xf32, #tpu.memory_space<vmem>>, vector<1x32x64xf32>
    %58 = vector.shape_cast %57 : vector<1x32x64xf32> to vector<32x64xf32>
    %cst_36 = arith.constant dense<0.000000e+00> : vector<64x64xf32>
    %59 = tpu.matmul %56, %58, %cst_36 {dimension_numbers = #tpu.dot_dimension_numbers<[1], [0], [0], [1], [0, 0, 1, 1], [], []>} : vector<64x32xf32>, vector<32x64xf32>, vector<64x64xf32> -> vector<64x64xf32>
    %c4 = arith.constant 4 : index
    %c0_37 = arith.constant 0 : index
    %60 = vector.load %arg8[%c4, %c0_37] : memref<8x64xf32, #tpu.memory_space<vmem>>, vector<1x64xf32>
    %61 = vector.broadcast %60 : vector<1x64xf32> to vector<64x64xf32>
    %62 = arith.addf %59, %61 : vector<64x64xf32>
    %63 = vector.extract_strided_slice %62 {offsets = [0, 0], sizes = [64, 32], strides = [1, 1]} : vector<64x64xf32> to vector<64x32xf32>
    %64 = vector.extract_strided_slice %62 {offsets = [0, 32], sizes = [64, 32], strides = [1, 1]} : vector<64x64xf32> to vector<64x32xf32>
    %cst_38 = arith.constant 5.000000e-01 : f32
    %65 = vector.broadcast %cst_38 : f32 to vector<64x32xf32>
    %66 = arith.mulf %65, %64 : vector<64x32xf32>
    %67 = math.exp %66 : vector<64x32xf32>
    %68 = arith.mulf %2, %67 : vector<64x32xf32>
    %69 = arith.addf %63, %68 : vector<64x32xf32>
    %c2_39 = arith.constant 2 : index
    %c0_40 = arith.constant 0 : index
    %c0_41 = arith.constant 0 : index
    %70 = vector.load %arg6[%c2_39, %c0_40, %c0_41] : memref<3x32x64xf32, #tpu.memory_space<vmem>>, vector<1x32x64xf32>
    %71 = vector.shape_cast %70 : vector<1x32x64xf32> to vector<32x64xf32>
    %cst_42 = arith.constant dense<0.000000e+00> : vector<64x64xf32>
    %72 = tpu.matmul %69, %71, %cst_42 {dimension_numbers = #tpu.dot_dimension_numbers<[1], [0], [0], [1], [0, 0, 1, 1], [], []>} : vector<64x32xf32>, vector<32x64xf32>, vector<64x64xf32> -> vector<64x64xf32>
    %73 = vector.extract_strided_slice %72 {offsets = [0, 0], sizes = [64, 32], strides = [1, 1]} : vector<64x64xf32> to vector<64x32xf32>
    %cst_43 = arith.constant dense<0.000000e+00> : vector<128x32xf32>
    %74 = tpu.matmul %4, %73, %cst_43 {dimension_numbers = #tpu.dot_dimension_numbers<[1], [0], [0], [1], [0, 0, 1, 1], [], []>} : vector<128x64xf32>, vector<64x32xf32>, vector<128x32xf32> -> vector<128x32xf32>
    %75 = vector.extract_strided_slice %72 {offsets = [0, 32], sizes = [64, 32], strides = [1, 1]} : vector<64x64xf32> to vector<64x32xf32>
    %cst_44 = arith.constant dense<0.000000e+00> : vector<128x32xf32>
    %76 = tpu.matmul %3, %75, %cst_44 {dimension_numbers = #tpu.dot_dimension_numbers<[1], [0], [0], [1], [0, 0, 1, 1], [], []>} : vector<128x64xf32>, vector<64x32xf32>, vector<128x32xf32> -> vector<128x32xf32>
    %77 = arith.addf %74, %76 : vector<128x32xf32>
    %c5 = arith.constant 5 : index
    %c0_45 = arith.constant 0 : index
    %78 = vector.load %arg8[%c5, %c0_45] : memref<8x64xf32, #tpu.memory_space<vmem>>, vector<1x64xf32>
    %79 = vector.extract_strided_slice %78 {offsets = [0, 0], sizes = [1, 32], strides = [1, 1]} : vector<1x64xf32> to vector<1x32xf32>
    %80 = vector.broadcast %79 : vector<1x32xf32> to vector<128x32xf32>
    %81 = arith.addf %77, %80 : vector<128x32xf32>
    %cst_46 = arith.constant 0.000000e+00 : f32
    %82 = vector.broadcast %cst_46 : f32 to vector<128x32xf32>
    %83 = arith.maximumf %81, %82 : vector<128x32xf32>
    %c1_47 = arith.constant 1 : index
    %c0_48 = arith.constant 0 : index
    %c0_49 = arith.constant 0 : index
    %84 = vector.load %arg7[%c1_47, %c0_48, %c0_49] : memref<3x32x32xf32, #tpu.memory_space<vmem>>, vector<1x32x32xf32>
    %85 = vector.shape_cast %84 : vector<1x32x32xf32> to vector<32x32xf32>
    %cst_50 = arith.constant dense<0.000000e+00> : vector<128x32xf32>
    %86 = tpu.matmul %83, %85, %cst_50 {dimension_numbers = #tpu.dot_dimension_numbers<[1], [0], [0], [1], [0, 0, 1, 1], [], []>} : vector<128x32xf32>, vector<32x32xf32>, vector<128x32xf32> -> vector<128x32xf32>
    %c6 = arith.constant 6 : index
    %c0_51 = arith.constant 0 : index
    %87 = vector.load %arg8[%c6, %c0_51] : memref<8x64xf32, #tpu.memory_space<vmem>>, vector<1x64xf32>
    %88 = vector.extract_strided_slice %87 {offsets = [0, 0], sizes = [1, 32], strides = [1, 1]} : vector<1x64xf32> to vector<1x32xf32>
    %89 = vector.broadcast %88 : vector<1x32xf32> to vector<128x32xf32>
    %90 = arith.addf %86, %89 : vector<128x32xf32>
    %cst_52 = arith.constant 0.000000e+00 : f32
    %91 = vector.broadcast %cst_52 : f32 to vector<128x32xf32>
    %92 = arith.maximumf %90, %91 : vector<128x32xf32>
    %c2_53 = arith.constant 2 : index
    %c0_54 = arith.constant 0 : index
    %c0_55 = arith.constant 0 : index
    %93 = vector.load %arg7[%c2_53, %c0_54, %c0_55] : memref<3x32x32xf32, #tpu.memory_space<vmem>>, vector<1x32x32xf32>
    %94 = vector.shape_cast %93 : vector<1x32x32xf32> to vector<32x32xf32>
    %cst_56 = arith.constant dense<0.000000e+00> : vector<128x32xf32>
    %95 = tpu.matmul %92, %94, %cst_56 {dimension_numbers = #tpu.dot_dimension_numbers<[1], [0], [0], [1], [0, 0, 1, 1], [], []>} : vector<128x32xf32>, vector<32x32xf32>, vector<128x32xf32> -> vector<128x32xf32>
    %c7 = arith.constant 7 : index
    %c0_57 = arith.constant 0 : index
    %96 = vector.load %arg8[%c7, %c0_57] : memref<8x64xf32, #tpu.memory_space<vmem>>, vector<1x64xf32>
    %97 = vector.extract_strided_slice %96 {offsets = [0, 0], sizes = [1, 32], strides = [1, 1]} : vector<1x64xf32> to vector<1x32xf32>
    %98 = vector.broadcast %97 : vector<1x32xf32> to vector<128x32xf32>
    %99 = arith.addf %95, %98 : vector<128x32xf32>
    %cst_58 = arith.constant dense<0.000000e+00> : vector<64x32xf32>
    %100 = tpu.matmul %5, %99, %cst_58 {dimension_numbers = #tpu.dot_dimension_numbers<[1], [0], [0], [1], [0, 0, 1, 1], [], []>} : vector<64x128xf32>, vector<128x32xf32>, vector<64x32xf32> -> vector<64x32xf32>
    %cst_59 = arith.constant 0.000000e+00 : f32
    %101 = vector.broadcast %cst_59 : f32 to vector<64x32xf32>
    %102 = tpu.concatenate %100, %62, %101 in 1 : vector<64x32xf32>, vector<64x64xf32>, vector<64x32xf32> -> vector<64x128xf32>
    %103 = vector.shape_cast %102 : vector<64x128xf32> to vector<4x16x128xf32>
    %c0_60 = arith.constant 0 : index
    %c0_61 = arith.constant 0 : index
    %c0_62 = arith.constant 0 : index
    %104 = vector.load %arg9[%c0_60, %c0_61, %c0_62] : memref<4x16x128xf32, #tpu.memory_space<vmem>>, vector<4x16x128xf32>
    tpu.vector_store %arg9[%c0_60, %c0_61, %c0_62], %103 {strides = array<i32>} : memref<4x16x128xf32, #tpu.memory_space<vmem>>, vector<4x16x128xf32>,
    return
  }
  func.func @transform_0(%arg0: i32) -> (i32, i32, i32) {
    %c0_i32 = arith.constant 0 : i32
    %c0_i32_0 = arith.constant 0 : i32
    %c0_i32_1 = arith.constant 0 : i32
    return %arg0, %c0_i32, %c0_i32_0 : i32, i32, i32
  }
  func.func @transform_1(%arg0: i32) -> (i32, i32, i32) {
    %c0_i32 = arith.constant 0 : i32
    %c0_i32_0 = arith.constant 0 : i32
    %c0_i32_1 = arith.constant 0 : i32
    return %arg0, %c0_i32, %c0_i32_0 : i32, i32, i32
  }
  func.func @transform_2(%arg0: i32) -> (i32, i32) {
    %c0_i32 = arith.constant 0 : i32
    %c0_i32_0 = arith.constant 0 : i32
    %c0_i32_1 = arith.constant 0 : i32
    return %c0_i32, %c0_i32_0 : i32, i32
  }
  func.func @transform_3(%arg0: i32) -> (i32, i32) {
    %c0_i32 = arith.constant 0 : i32
    %c0_i32_0 = arith.constant 0 : i32
    %c0_i32_1 = arith.constant 0 : i32
    return %c0_i32, %c0_i32_0 : i32, i32
  }
  func.func @transform_4(%arg0: i32) -> (i32, i32) {
    %c0_i32 = arith.constant 0 : i32
    %c0_i32_0 = arith.constant 0 : i32
    %c0_i32_1 = arith.constant 0 : i32
    return %c0_i32, %c0_i32_0 : i32, i32
  }
  func.func @transform_5(%arg0: i32) -> (i32, i32, i32) {
    %c0_i32 = arith.constant 0 : i32
    %c0_i32_0 = arith.constant 0 : i32
    %c0_i32_1 = arith.constant 0 : i32
    %c0_i32_2 = arith.constant 0 : i32
    return %c0_i32, %c0_i32_0, %c0_i32_1 : i32, i32, i32
  }
  func.func @transform_6(%arg0: i32) -> (i32, i32, i32) {
    %c0_i32 = arith.constant 0 : i32
    %c0_i32_0 = arith.constant 0 : i32
    %c0_i32_1 = arith.constant 0 : i32
    %c0_i32_2 = arith.constant 0 : i32
    return %c0_i32, %c0_i32_0, %c0_i32_1 : i32, i32, i32
  }
  func.func @transform_7(%arg0: i32) -> (i32, i32) {
    %c0_i32 = arith.constant 0 : i32
    %c0_i32_0 = arith.constant 0 : i32
    %c0_i32_1 = arith.constant 0 : i32
    return %c0_i32, %c0_i32_0 : i32, i32
  }
  func.func @transform_8(%arg0: i32) -> (i32, i32, i32) {
    %c0_i32 = arith.constant 0 : i32
    %c0_i32_0 = arith.constant 0 : i32
    %c0_i32_1 = arith.constant 0 : i32
    return %arg0, %c0_i32, %c0_i32_0 : i32, i32, i32
  }
}

</mosaic_0001>

<llo_original>
// kernel: tpu_custom_call.1
$region0: #{tpu_custom_call.1}
  #allocation0 [shape = 'u32[]', space=smem, size = 0x4, offset = 0x4, fixed_abs, tag = 'smem constant byte address 0x4 - core index']
  #allocation1 [shape = 'u32[144,128]{1,0:T(1,128)}', space=vmem, size = 0x12000, scoped, tag = 'internal scratch']
  %s0 = inlined_call_operand.vmem [shape: f32[8,16,32], index: 0, kind: input, shape index: {}]
  %s1 = inlined_call_operand.vmem [shape: f32[8,16,32], index: 1, kind: input, shape index: {}]
  %s2 = inlined_call_operand.vmem [shape: f32[128,64], index: 2, kind: input, shape index: {}]
  %s3 = inlined_call_operand.vmem [shape: f32[128,64], index: 3, kind: input, shape index: {}]
  %s4 = inlined_call_operand.hbm [shape: f32[64,128], index: 4, kind: input, shape index: {}]
  %s5 = inlined_call_operand.vmem [shape: f32[3,32,64], index: 5, kind: input, shape index: {}]
  %s6 = inlined_call_operand.hbm [shape: f32[3,32,32], index: 6, kind: input, shape index: {}]
  %s7 = inlined_call_operand.vmem [shape: f32[8,64], index: 7, kind: input, shape index: {}]
  %s8 = inlined_call_operand.hbm [shape: f32[8,16,128], index: 8, kind: output, shape index: {}]
  %s9 = sld [smem:[#allocation0]]
  $region73: #{tpu_custom_call.1} parent=0
    _
  %s11 = ssub.s32 1, %s9
  %s12 = scalar_select 0, %s11, %s9
  $region1: #{tpu_custom_call.1} parent=0
    #allocation2 [shape = 'u8[32768]{0}', space=vmem, size = 0x8000, scoped, tag = 'input window, operand 4, single buffered']
    #allocation3 [shape = 's32[2]{0}', space=sflag, size = 0x8, scoped, tag = 'scoped memory for tpu_custom_call.1']
    #allocation4 [shape = 's32[2]{0}', space=sflag, size = 0x8, scoped, tag = 'scoped memory for tpu_custom_call.1']
    #allocation5 [shape = 'u8[49152]{0}', space=vmem, size = 0xc000, scoped, tag = 'input window, operand 6, single buffered']
    #allocation6 [shape = 's32[1]{0}', space=sflag, size = 0x4, scoped, tag = 'scoped memory for tpu_custom_call.1']
    #allocation7 [shape = 'u8[65536]{0}', space=vmem, size = 0x10000, scoped, tag = 'output window, operand 0']
    %13 = vsyncpa [#allocation3], 0
    %14 = vsyncpa [#allocation6], 0
    %15 = vsyncpa [#allocation4], 0
    %s16 = scalar_lea.sflag [#allocation4], 1
    %17 = vsyncpa %s16, 0
    loop: start=0, step=1, limit=4
    $region2: #{tpu_custom_call.1} parent=1 // loop_pre_header
      _
    $region3: #{tpu_custom_call.1} parent=1 // loop_header
      %s19 = sphi 0, %s23
      %p20 = scmp.ge.s32.totalorder %s19, 4
      %s29 = sphi 0, %s31
      %s32 = sphi 0, %s29
      %s33 = sphi 0, %s32
      %s49 = sphi 0, %s33
      %s55 = sphi 0, %s57
      %s58 = sphi 0, %s55
      %s59 = sphi 0, %s58
      %s75 = sphi 0, %s59
      %s79 = sphi 0, %s79
      %s81 = sphi 0, %s79
      %s82 = sphi 0, %s81
      %s96 = sphi 0, %s82
      %s100 = sphi 0, %s100
      %s102 = sphi 0, %s100
      %s103 = sphi 0, %s102
      %s117 = sphi 0, %s103
      %s121 = sphi 0, %s121
      %s123 = sphi 0, %s121
      %s124 = sphi 0, %s123
      %s138 = sphi 0, %s124
      %s142 = sphi 0, %s142
      %s144 = sphi 0, %s142
      %s145 = sphi 0, %s144
      %s159 = sphi 0, %s145
      %s163 = sphi 0, %s163
      %s165 = sphi 0, %s163
      %s166 = sphi 0, %s165
      %s180 = sphi 0, %s166
      %s184 = sphi 0, %s184
      %s186 = sphi 0, %s184
      %s187 = sphi 0, %s186
      %s201 = sphi 0, %s187
      %s207 = sphi 0, %s209
      %s210 = sphi 0, %s207
      %s211 = sphi 0, %s210
      %s227 = sphi 0, %s211
    $region4: #{tpu_custom_call.1} parent=1 // loop_header_branch
      %22 = sbr.rel (%p20) target = $region8
    $region5: #{tpu_custom_call.1} parent=1 // loop_body
      %s24 = ssub.s32 %s19, 1
      %s25 = ssub.s32 %s19, 2
      %s26 = sadd.s32 %s19, 1
      %s27 = ssub.s32 %s19, %s26
      %p28 = scmp.eq.s32.totalorder %s27, 0
      %s30 = sadd.s32 %s29, 1
      %s31 = scalar_select %p28, %s29, %s30
      %p34 = pneg %p28
      %p35 = scmp.eq.s32.totalorder %s19, 1
      %p36 = por %p34, %p35
      %p37 = scmp.ne.s32.totalorder %s29, %s32
      %p38 = scmp.eq.s32.totalorder %s19, 0
      %p39 = por %p37, %p38
      %p40 = scmp.ne.s32.totalorder %s29, %s32
      %p41 = scmp.eq.s32.totalorder %s24, 1
      %p42 = por %p40, %p41
      %p43 = scmp.ne.s32.totalorder %s32, %s33
      %p44 = scmp.eq.s32.totalorder %s24, 0
      %p45 = por %p43, %p44
      %p46 = scmp.ne.s32.totalorder %s32, %s33
      %p47 = scmp.eq.s32.totalorder %s25, 1
      %p48 = por %p46, %p47
      %p50 = scmp.ne.s32.totalorder %s33, %s49
      %p51 = scmp.eq.s32.totalorder %s25, 0
      %p52 = por %p50, %p51
      %s53 = ssub.s32 %s19, %s26
      %p54 = scmp.eq.s32.totalorder %s53, 0
      %s56 = sadd.s32 %s55, 1
      %s57 = scalar_select %p54, %s55, %s56
      %p60 = pneg %p54
      %p61 = scmp.eq.s32.totalorder %s19, 1
      %p62 = por %p60, %p61
      %p63 = scmp.ne.s32.totalorder %s55, %s58
      %p64 = scmp.eq.s32.totalorder %s19, 0
      %p65 = por %p63, %p64
      %p66 = scmp.ne.s32.totalorder %s55, %s58
      %p67 = scmp.eq.s32.totalorder %s24, 1
      %p68 = por %p66, %p67
      %p69 = scmp.ne.s32.totalorder %s58, %s59
      %p70 = scmp.eq.s32.totalorder %s24, 0
      %p71 = por %p69, %p70
      %p72 = scmp.ne.s32.totalorder %s58, %s59
      %p73 = scmp.eq.s32.totalorder %s25, 1
      %p74 = por %p72, %p73
      %p76 = scmp.ne.s32.totalorder %s59, %s75
      %p77 = scmp.eq.s32.totalorder %s25, 0
      %p78 = por %p76, %p77
      %s80 = sadd.s32 %s79, 1
      %p83 = scmp.eq.s32.totalorder %s19, 1
      %p84 = scmp.ne.s32.totalorder %s79, %s81
      %p85 = scmp.eq.s32.totalorder %s19, 0
      %p86 = por %p84, %p85
      %p87 = scmp.ne.s32.totalorder %s79, %s81
      %p88 = scmp.eq.s32.totalorder %s24, 1
      %p89 = por %p87, %p88
      %p90 = scmp.ne.s32.totalorder %s81, %s82
      %p91 = scmp.eq.s32.totalorder %s24, 0
      %p92 = por %p90, %p91
      %p93 = scmp.ne.s32.totalorder %s81, %s82
      %p94 = scmp.eq.s32.totalorder %s25, 1
      %p95 = por %p93, %p94
      %p97 = scmp.ne.s32.totalorder %s82, %s96
      %p98 = scmp.eq.s32.totalorder %s25, 0
      %p99 = por %p97, %p98
      %s101 = sadd.s32 %s100, 1
      %p104 = scmp.eq.s32.totalorder %s19, 1
      %p105 = scmp.ne.s32.totalorder %s100, %s102
      %p106 = scmp.eq.s32.totalorder %s19, 0
      %p107 = por %p105, %p106
      %p108 = scmp.ne.s32.totalorder %s100, %s102
      %p109 = scmp.eq.s32.totalorder %s24, 1
      %p110 = por %p108, %p109
      %p111 = scmp.ne.s32.totalorder %s102, %s103
      %p112 = scmp.eq.s32.totalorder %s24, 0
      %p113 = por %p111, %p112
      %p114 = scmp.ne.s32.totalorder %s102, %s103
      %p115 = scmp.eq.s32.totalorder %s25, 1
      %p116 = por %p114, %p115
      %p118 = scmp.ne.s32.totalorder %s103, %s117
      %p119 = scmp.eq.s32.totalorder %s25, 0
      %p120 = por %p118, %p119
      %s122 = sadd.s32 %s121, 1
      %p125 = scmp.eq.s32.totalorder %s19, 1
      %p126 = scmp.ne.s32.totalorder %s121, %s123
      %p127 = scmp.eq.s32.totalorder %s19, 0
      %p128 = por %p126, %p127
      %p129 = scmp.ne.s32.totalorder %s121, %s123
      %p130 = scmp.eq.s32.totalorder %s24, 1
      %p131 = por %p129, %p130
      %p132 = scmp.ne.s32.totalorder %s123, %s124
      %p133 = scmp.eq.s32.totalorder %s24, 0
      %p134 = por %p132, %p133
      %p135 = scmp.ne.s32.totalorder %s123, %s124
      %p136 = scmp.eq.s32.totalorder %s25, 1
      %p137 = por %p135, %p136
      %p139 = scmp.ne.s32.totalorder %s124, %s138
      %p140 = scmp.eq.s32.totalorder %s25, 0
      %p141 = por %p139, %p140
      %s143 = sadd.s32 %s142, 1
      %p146 = scmp.eq.s32.totalorder %s19, 1
      %p147 = scmp.ne.s32.totalorder %s142, %s144
      %p148 = scmp.eq.s32.totalorder %s19, 0
      %p149 = por %p147, %p148
      %p150 = scmp.ne.s32.totalorder %s142, %s144
      %p151 = scmp.eq.s32.totalorder %s24, 1
      %p152 = por %p150, %p151
      %p153 = scmp.ne.s32.totalorder %s144, %s145
      %p154 = scmp.eq.s32.totalorder %s24, 0
      %p155 = por %p153, %p154
      %p156 = scmp.ne.s32.totalorder %s144, %s145
      %p157 = scmp.eq.s32.totalorder %s25, 1
      %p158 = por %p156, %p157
      %p160 = scmp.ne.s32.totalorder %s145, %s159
      %p161 = scmp.eq.s32.totalorder %s25, 0
      %p162 = por %p160, %p161
      %s164 = sadd.s32 %s163, 1
      %p167 = scmp.eq.s32.totalorder %s19, 1
      %p168 = scmp.ne.s32.totalorder %s163, %s165
      %p169 = scmp.eq.s32.totalorder %s19, 0
      %p170 = por %p168, %p169
      %p171 = scmp.ne.s32.totalorder %s163, %s165
      %p172 = scmp.eq.s32.totalorder %s24, 1
      %p173 = por %p171, %p172
      %p174 = scmp.ne.s32.totalorder %s165, %s166
      %p175 = scmp.eq.s32.totalorder %s24, 0
      %p176 = por %p174, %p175
      %p177 = scmp.ne.s32.totalorder %s165, %s166
      %p178 = scmp.eq.s32.totalorder %s25, 1
      %p179 = por %p177, %p178
      %p181 = scmp.ne.s32.totalorder %s166, %s180
      %p182 = scmp.eq.s32.totalorder %s25, 0
      %p183 = por %p181, %p182
      %s185 = sadd.s32 %s184, 1
      %p188 = scmp.eq.s32.totalorder %s19, 1
      %p189 = scmp.ne.s32.totalorder %s184, %s186
      %p190 = scmp.eq.s32.totalorder %s19, 0
      %p191 = por %p189, %p190
      %p192 = scmp.ne.s32.totalorder %s184, %s186
      %p193 = scmp.eq.s32.totalorder %s24, 1
      %p194 = por %p192, %p193
      %p195 = scmp.ne.s32.totalorder %s186, %s187
      %p196 = scmp.eq.s32.totalorder %s24, 0
      %p197 = por %p195, %p196
      %p198 = scmp.ne.s32.totalorder %s186, %s187
      %p199 = scmp.eq.s32.totalorder %s25, 1
      %p200 = por %p198, %p199
      %p202 = scmp.ne.s32.totalorder %s187, %s201
      %p203 = scmp.eq.s32.totalorder %s25, 0
      %p204 = por %p202, %p203
      %s205 = ssub.s32 %s19, %s26
      %p206 = scmp.eq.s32.totalorder %s205, 0
      %s208 = sadd.s32 %s207, 1
      %s209 = scalar_select %p206, %s207, %s208
      %p212 = pneg %p206
      %p213 = scmp.eq.s32.totalorder %s19, 1
      %p214 = por %p212, %p213
      %p215 = scmp.ne.s32.totalorder %s207, %s210
      %p216 = scmp.eq.s32.totalorder %s19, 0
      %p217 = por %p215, %p216
      %p218 = scmp.ne.s32.totalorder %s207, %s210
      %p219 = scmp.eq.s32.totalorder %s24, 1
      %p220 = por %p218, %p219
      %p221 = scmp.ne.s32.totalorder %s210, %s211
      %p222 = scmp.eq.s32.totalorder %s24, 0
      %p223 = por %p221, %p222
      %p224 = scmp.ne.s32.totalorder %s210, %s211
      %p225 = scmp.eq.s32.totalorder %s25, 1
      %p226 = por %p224, %p225
      %p228 = scmp.ne.s32.totalorder %s211, %s227
      %p229 = scmp.eq.s32.totalorder %s25, 0
      %p230 = por %p228, %p229
      %p231 = scmp.le.s32.totalorder 1, %s19
      %p232 = scmp.lt.s32.totalorder %s19, 3
      %p233 = pnand %p231, %p232
      %p234 = pneg %p233
      // Predicated region
      $region9: #{tpu_custom_call.1} parent=5 // pred_check
        _
      $region10: #{tpu_custom_call.1} parent=5 // pred_check_branch
        %236 = sbr.rel (%p233) target = $region12
      $region11: #{tpu_custom_call.1} parent=5 // pred_region
        %s237 = ssub.s32 %s19, 1
        // Predicated region
        $region13: #{tpu_custom_call.1} parent=11 // pred_check
          %p238 = pneg %p92
        $region14: #{tpu_custom_call.1} parent=11 // pred_check_branch
          %240 = sbr.rel (%p238) target = $region16
        $region15: #{tpu_custom_call.1} parent=11 // pred_region
          _
        $region16: #{tpu_custom_call.1} parent=11 // pred_fallthru
          _
        // Predicated region
        $region17: #{tpu_custom_call.1} parent=11 // pred_check
          %p241 = pneg %p113
        $region18: #{tpu_custom_call.1} parent=11 // pred_check_branch
          %243 = sbr.rel (%p241) target = $region20
        $region19: #{tpu_custom_call.1} parent=11 // pred_region
          _
        $region20: #{tpu_custom_call.1} parent=11 // pred_fallthru
          _
        // Predicated region
        $region21: #{tpu_custom_call.1} parent=11 // pred_check
          %p244 = pneg %p134
        $region22: #{tpu_custom_call.1} parent=11 // pred_check_branch
          %246 = sbr.rel (%p244) target = $region24
        $region23: #{tpu_custom_call.1} parent=11 // pred_region
          %s248 = ssub.s32 1024, 1024
          %249 = vsyncadd [#allocation3], %s248
          %s250 = sshll.u32 [#allocation2], 4
          %s251 = int_to_ptr.vmem [resolvable:$true] %s250
          %256 = dma.hbm_to_vmem [thread:$0]  %s4, 1024, %s251, [#allocation3], 128, 128, 8
        $region24: #{tpu_custom_call.1} parent=11 // pred_fallthru
          _
        // Predicated region
        $region25: #{tpu_custom_call.1} parent=11 // pred_check
          %p257 = pneg %p155
        $region26: #{tpu_custom_call.1} parent=11 // pred_check_branch
          %259 = sbr.rel (%p257) target = $region28
        $region27: #{tpu_custom_call.1} parent=11 // pred_region
          _
        $region28: #{tpu_custom_call.1} parent=11 // pred_fallthru
          _
        // Predicated region
        $region29: #{tpu_custom_call.1} parent=11 // pred_check
          %p260 = pneg %p176
        $region30: #{tpu_custom_call.1} parent=11 // pred_check_branch
          %262 = sbr.rel (%p260) target = $region32
        $region31: #{tpu_custom_call.1} parent=11 // pred_region
          %s264 = ssub.s32 1536, 1536
          %265 = vsyncadd [#allocation6], %s264
          %s266 = sshll.u32 [#allocation5], 4
          %s267 = int_to_ptr.vmem [resolvable:$true] %s266
          %272 = dma.hbm_to_vmem [thread:$0]  %s6, 1536, %s267, [#allocation6], 128, 128, 8
        $region32: #{tpu_custom_call.1} parent=11 // pred_fallthru
          _
        // Predicated region
        $region33: #{tpu_custom_call.1} parent=11 // pred_check
          %p273 = pneg %p197
        $region34: #{tpu_custom_call.1} parent=11 // pred_check_branch
          %275 = sbr.rel (%p273) target = $region36
        $region35: #{tpu_custom_call.1} parent=11 // pred_region
          _
        $region36: #{tpu_custom_call.1} parent=11 // pred_fallthru
          _
      $region12: #{tpu_custom_call.1} parent=5 // pred_fallthru
        _
      %p276 = scmp.lt.s32.totalorder %s19, 2
      // Predicated region
      $region37: #{tpu_custom_call.1} parent=5 // pred_check
        %p277 = pneg %p276
      $region38: #{tpu_custom_call.1} parent=5 // pred_check_branch
        %279 = sbr.rel (%p277) target = $region40
      $region39: #{tpu_custom_call.1} parent=5 // pred_region
        // Predicated region
        $region41: #{tpu_custom_call.1} parent=39 // pred_check
          %p280 = pneg %p39
        $region42: #{tpu_custom_call.1} parent=39 // pred_check_branch
          %282 = sbr.rel (%p280) target = $region44
        $region43: #{tpu_custom_call.1} parent=39 // pred_region
          %s283 = smul.u32 4, %s19
          %p284 = scmp.lt.s32.totalorder %s283, 7
          %s285 = scalar_select %p284, %s283, 7
          %s286 = smul.addr %s285, 2
          %s287 = smul.addr %s286, 8
          %s288 = scalar_lea.vmem %s0, %s287
          %s289 = smul.u32 4, %s19
        $region44: #{tpu_custom_call.1} parent=39 // pred_fallthru
          _
        // Predicated region
        $region45: #{tpu_custom_call.1} parent=39 // pred_check
          %p290 = pneg %p65
        $region46: #{tpu_custom_call.1} parent=39 // pred_check_branch
          %292 = sbr.rel (%p290) target = $region48
        $region47: #{tpu_custom_call.1} parent=39 // pred_region
          %s293 = smul.u32 4, %s19
          %p294 = scmp.lt.s32.totalorder %s293, 7
          %s295 = scalar_select %p294, %s293, 7
          %s296 = smul.addr %s295, 2
          %s297 = smul.addr %s296, 8
          %s298 = scalar_lea.vmem %s1, %s297
          %s299 = smul.u32 4, %s19
        $region48: #{tpu_custom_call.1} parent=39 // pred_fallthru
          _
      $region40: #{tpu_custom_call.1} parent=5 // pred_fallthru
        _
      %p300 = scmp.le.s32.totalorder 1, %s19
      %p301 = scmp.lt.s32.totalorder %s19, 3
      %p302 = pnand %p300, %p301
      %p303 = pneg %p302
      // Predicated region
      $region49: #{tpu_custom_call.1} parent=5 // pred_check
        _
      $region50: #{tpu_custom_call.1} parent=5 // pred_check_branch
        %305 = sbr.rel (%p302) target = $region52
      $region51: #{tpu_custom_call.1} parent=5 // pred_region
        %s306 = ssub.s32 %s19, 1
        // Predicated region
        $region53: #{tpu_custom_call.1} parent=51 // pred_check
          %p307 = pneg %p134
        $region54: #{tpu_custom_call.1} parent=51 // pred_check_branch
          %309 = sbr.rel (%p307) target = $region56
        $region55: #{tpu_custom_call.1} parent=51 // pred_region
          %310 = dma.done [#allocation3], 1024
        $region56: #{tpu_custom_call.1} parent=51 // pred_fallthru
          _
        // Predicated region
        $region57: #{tpu_custom_call.1} parent=51 // pred_check
          %p311 = pneg %p176
        $region58: #{tpu_custom_call.1} parent=51 // pred_check_branch
          %313 = sbr.rel (%p311) target = $region60
        $region59: #{tpu_custom_call.1} parent=51 // pred_region
          %314 = dma.done [#allocation6], 1536
        $region60: #{tpu_custom_call.1} parent=51 // pred_fallthru
          _
        %s315 = smul.u32 4, %s24
        %p316 = scmp.lt.s32.totalorder %s315, 7
        %s317 = scalar_select %p316, %s315, 7
        %s318 = smul.addr %s317, 2
        %s319 = smul.addr %s318, 8
        %s320 = scalar_lea.vmem %s0, %s319
        %p321 = pneg %p45
        %p322 = pneg %p42
        %s323 = smul.u32 4, %s24
        %p324 = scmp.lt.s32.totalorder %s323, 7
        %s325 = scalar_select %p324, %s323, 7
        %s326 = smul.addr %s325, 2
        %s327 = smul.addr %s326, 8
        %s328 = scalar_lea.vmem %s1, %s327
        %p329 = pneg %p71
        %p330 = pneg %p68
        %p331 = pneg %p92
        %p332 = pneg %p89
        %p333 = pneg %p113
        %p334 = pneg %p110
        %p335 = pneg %p134
        %p336 = pneg %p131
        %p337 = pneg %p155
        %p338 = pneg %p152
        %p339 = pneg %p176
        %p340 = pneg %p173
        %p341 = pneg %p197
        %p342 = pneg %p194
        %p343 = pneg %p223
        %p344 = pneg %p220
        %s345 = sand.u32 %s210, 1
        %s346 = scalar_lea.sflag [#allocation4], %s345
        %s347 = sand.u32 %s210, 1
        %s348 = smul.addr %s347, 64
        %s349 = scalar_lea.vmem [#allocation7], %s348
        %s350 = smul.u32 4, %s24
        %p351 = scmp.lt.s32.totalorder %s350, 7
        %s352 = scalar_select %p351, %s350, 7
        %s353 = smul.addr %s352, 2
        %s354 = smul.addr %s353, 8
        %s355 = scalar_lea.vmem %s0, %s354
        %s356 = smul.u32 4, %s24
        %s357 = smul.u32 4, %s24
        %p358 = scmp.lt.s32.totalorder %s357, 7
        %s359 = scalar_select %p358, %s357, 7
        %s360 = smul.addr %s359, 2
        %s361 = smul.addr %s360, 8
        %s362 = scalar_lea.vmem %s1, %s361
        %s363 = smul.u32 4, %s24
        %s364 = smul.u32 4, %s24
        %v365 = vld [vmem:[%s355] sm:$0xff]
        %v366 = vld [vmem:[%s355 + $0x8] sm:$0xff]
        %v367 = vld [vmem:[%s355 + $0x10] sm:$0xff]
        %v368 = vld [vmem:[%s355 + $0x18] sm:$0xff]
        %v369 = vld [vmem:[%s355 + $0x20] sm:$0xff]
        %v370 = vld [vmem:[%s355 + $0x28] sm:$0xff]
        %v371 = vld [vmem:[%s355 + $0x30] sm:$0xff]
        %v372 = vld [vmem:[%s355 + $0x38] sm:$0xff]
        %v373 = vld [vmem:[%s362] sm:$0xff]
        %v374 = vld [vmem:[%s362 + $0x8] sm:$0xff]
        %v375 = vld [vmem:[%s362 + $0x10] sm:$0xff]
        %v376 = vld [vmem:[%s362 + $0x18] sm:$0xff]
        %v377 = vld [vmem:[%s362 + $0x20] sm:$0xff]
        %v378 = vld [vmem:[%s362 + $0x28] sm:$0xff]
        %v379 = vld [vmem:[%s362 + $0x30] sm:$0xff]
        %v380 = vld [vmem:[%s362 + $0x38] sm:$0xff]
        %v381 = vld [vmem:[%s2] sm:$0xff]
        %v382 = vld [vmem:[%s2 + $0x8] sm:$0xff]
        %v383 = vld [vmem:[%s2 + $0x10] sm:$0xff]
        %v384 = vld [vmem:[%s2 + $0x18] sm:$0xff]
        %v385 = vld [vmem:[%s2 + $0x20] sm:$0xff]
        %v386 = vld [vmem:[%s2 + $0x28] sm:$0xff]
        %v387 = vld [vmem:[%s2 + $0x30] sm:$0xff]
        %v388 = vld [vmem:[%s2 + $0x38] sm:$0xff]
        %v389 = vld [vmem:[%s2 + $0x40] sm:$0xff]
        %v390 = vld [vmem:[%s2 + $0x48] sm:$0xff]
        %v391 = vld [vmem:[%s2 + $0x50] sm:$0xff]
        %v392 = vld [vmem:[%s2 + $0x58] sm:$0xff]
        %v393 = vld [vmem:[%s2 + $0x60] sm:$0xff]
        %v394 = vld [vmem:[%s2 + $0x68] sm:$0xff]
        %v395 = vld [vmem:[%s2 + $0x70] sm:$0xff]
        %v396 = vld [vmem:[%s2 + $0x78] sm:$0xff]
        %v397 = vld [vmem:[%s3] sm:$0xff]
        %v398 = vld [vmem:[%s3 + $0x8] sm:$0xff]
        %v399 = vld [vmem:[%s3 + $0x10] sm:$0xff]
        %v400 = vld [vmem:[%s3 + $0x18] sm:$0xff]
        %v401 = vld [vmem:[%s3 + $0x20] sm:$0xff]
        %v402 = vld [vmem:[%s3 + $0x28] sm:$0xff]
        %v403 = vld [vmem:[%s3 + $0x30] sm:$0xff]
        %v404 = vld [vmem:[%s3 + $0x38] sm:$0xff]
        %v405 = vld [vmem:[%s3 + $0x40] sm:$0xff]
        %v406 = vld [vmem:[%s3 + $0x48] sm:$0xff]
        %v407 = vld [vmem:[%s3 + $0x50] sm:$0xff]
        %v408 = vld [vmem:[%s3 + $0x58] sm:$0xff]
        %v409 = vld [vmem:[%s3 + $0x60] sm:$0xff]
        %v410 = vld [vmem:[%s3 + $0x68] sm:$0xff]
        %v411 = vld [vmem:[%s3 + $0x70] sm:$0xff]
        %v412 = vld [vmem:[%s3 + $0x78] sm:$0xff]
        %v413 = vld [vmem:[#allocation2] sm:$0xff]
        %v414 = vld [vmem:[#allocation2 + $0x8] sm:$0xff]
        %v415 = vld [vmem:[#allocation2 + $0x10] sm:$0xff]
        %v416 = vld [vmem:[#allocation2 + $0x18] sm:$0xff]
        %v417 = vld [vmem:[#allocation2 + $0x20] sm:$0xff]
        %v418 = vld [vmem:[#allocation2 + $0x28] sm:$0xff]
        %v419 = vld [vmem:[#allocation2 + $0x30] sm:$0xff]
        %v420 = vld [vmem:[#allocation2 + $0x38] sm:$0xff]
        %vm421 = vcmask 261120
        %v422 = vsel %vm421, %v365, 0.0
        %v423 = vsel %vm421, %v366, 0.0
        %v424 = vadd.f32 %v422, %v423
        %v425 = vrot.slane %v424, 4
        %v426 = vadd.f32 %v424, %v425
        %v427 = vrot.slane %v426, 2
        %v428 = vadd.f32 %v426, %v427
        %v429 = vrot.slane %v428, 1
        %v430 = vadd.f32 %v428, %v429
        %v431 = vsel %vm421, %v367, 0.0
        %v432 = vsel %vm421, %v368, 0.0
        %v433 = vadd.f32 %v431, %v432
        %v434 = vrot.slane %v433, 4
        %v435 = vadd.f32 %v433, %v434
        %v436 = vrot.slane %v435, 2
        %v437 = vadd.f32 %v435, %v436
        %v438 = vrot.slane %v437, 1
        %v439 = vadd.f32 %v437, %v438
        %v440 = vsel %vm421, %v369, 0.0
        %v441 = vsel %vm421, %v370, 0.0
        %v442 = vadd.f32 %v440, %v441
        %v443 = vrot.slane %v442, 4
        %v444 = vadd.f32 %v442, %v443
        %v445 = vrot.slane %v444, 2
        %v446 = vadd.f32 %v444, %v445
        %v447 = vrot.slane %v446, 1
        %v448 = vadd.f32 %v446, %v447
        %v449 = vsel %vm421, %v371, 0.0
        %v450 = vsel %vm421, %v372, 0.0
        %v451 = vadd.f32 %v449, %v450
        %v452 = vrot.slane %v451, 4
        %v453 = vadd.f32 %v451, %v452
        %v454 = vrot.slane %v453, 2
        %v455 = vadd.f32 %v453, %v454
        %v456 = vrot.slane %v455, 1
        %v457 = vadd.f32 %v455, %v456
        %v458 = vrcp.pop 16.0
        %v459 = vmul.f32 %v430, %v458
        %v460 = vmul.f32 %v439, %v458
        %v461 = vmul.f32 %v448, %v458
        %v462 = vmul.f32 %v457, %v458
        %v463 = vsub.f32 %v365, %v459
        %v464 = vsub.f32 %v366, %v459
        %v465 = vsub.f32 %v367, %v460
        %v466 = vsub.f32 %v368, %v460
        %v467 = vsub.f32 %v369, %v461
        %v468 = vsub.f32 %v370, %v461
        %v469 = vsub.f32 %v371, %v462
        %v470 = vsub.f32 %v372, %v462
        %v471 = vmul.f32 %v463, %v463
        %v472 = vmul.f32 %v464, %v464
        %v473 = vmul.f32 %v465, %v465
        %v474 = vmul.f32 %v466, %v466
        %v475 = vmul.f32 %v467, %v467
        %v476 = vmul.f32 %v468, %v468
        %v477 = vmul.f32 %v469, %v469
        %v478 = vmul.f32 %v470, %v470
        %v479 = vsel %vm421, %v471, 0.0
        %v480 = vsel %vm421, %v472, 0.0
        %v481 = vadd.f32 %v479, %v480
        %v482 = vrot.slane %v481, 4
        %v483 = vadd.f32 %v481, %v482
        %v484 = vrot.slane %v483, 2
        %v485 = vadd.f32 %v483, %v484
        %v486 = vrot.slane %v485, 1
        %v487 = vadd.f32 %v485, %v486
        %v488 = vsel %vm421, %v473, 0.0
        %v489 = vsel %vm421, %v474, 0.0
        %v490 = vadd.f32 %v488, %v489
        %v491 = vrot.slane %v490, 4
        %v492 = vadd.f32 %v490, %v491
        %v493 = vrot.slane %v492, 2
        %v494 = vadd.f32 %v492, %v493
        %v495 = vrot.slane %v494, 1
        %v496 = vadd.f32 %v494, %v495
        %v497 = vsel %vm421, %v475, 0.0
        %v498 = vsel %vm421, %v476, 0.0
        %v499 = vadd.f32 %v497, %v498
        %v500 = vrot.slane %v499, 4
        %v501 = vadd.f32 %v499, %v500
        %v502 = vrot.slane %v501, 2
        %v503 = vadd.f32 %v501, %v502
        %v504 = vrot.slane %v503, 1
        %v505 = vadd.f32 %v503, %v504
        %v506 = vsel %vm421, %v477, 0.0
        %v507 = vsel %vm421, %v478, 0.0
        %v508 = vadd.f32 %v506, %v507
        %v509 = vrot.slane %v508, 4
        %v510 = vadd.f32 %v508, %v509
        %v511 = vrot.slane %v510, 2
        %v512 = vadd.f32 %v510, %v511
        %v513 = vrot.slane %v512, 1
        %v514 = vadd.f32 %v512, %v513
        %v515 = vmul.f32 %v487, %v458
        %v516 = vmul.f32 %v496, %v458
        %v517 = vmul.f32 %v505, %v458
        %v518 = vmul.f32 %v514, %v458
        %v519 = vadd.f32 %v515, 1e-05
        %v520 = vadd.f32 %v516, 1e-05
        %v521 = vadd.f32 %v517, 1e-05
        %v522 = vadd.f32 %v518, 1e-05
        %v523 = vrsqrt.pop %v519
        %v524 = vrsqrt.pop %v520
        %v525 = vrsqrt.pop %v521
        %v526 = vrsqrt.pop %v522
        %v527 = vld [vmem:[%s7] sm:$0x1]
        %v528 = vmul.f32 %v523, %v527
        %v529 = vmul.f32 %v524, %v527
        %v530 = vmul.f32 %v525, %v527
        %v531 = vmul.f32 %v526, %v527
        %v532 = vlaneseq
        %v533 = vshrl.u32 %v532, 7
        %v534 = vsub.s32 0, %v533
        %v535 = vrot.slane %v528, %v534
        %v536 = vlaneseq
        %v537 = vshrl.u32 %v536, 7
        %v538 = vsub.s32 0, %v537
        %v539 = vrot.slane %v529, %v538
        %v540 = vlaneseq
        %v541 = vshrl.u32 %v540, 7
        %v542 = vsub.s32 0, %v541
        %v543 = vrot.slane %v530, %v542
        %v544 = vlaneseq
        %v545 = vshrl.u32 %v544, 7
        %v546 = vsub.s32 0, %v545
        %v547 = vrot.slane %v531, %v546
        %v548 = vmul.f32 %v463, %v535
        %v549 = vmul.f32 %v464, %v535
        %v550 = vmul.f32 %v465, %v539
        %v551 = vmul.f32 %v466, %v539
        %v552 = vmul.f32 %v467, %v543
        %v553 = vmul.f32 %v468, %v543
        %v554 = vmul.f32 %v469, %v547
        %v555 = vmul.f32 %v470, %v547
        %v556 = vld [vmem:[%s7 + $0x1] sm:$0x1]
        %v557 = vlaneseq
        %v558 = vshrl.u32 %v557, 7
        %v559 = vsub.s32 0, %v558
        %v560 = vrot.slane %v556, %v559
        %v561 = vadd.f32 %v548, %v560
        %v562 = vadd.f32 %v549, %v560
        %v563 = vadd.f32 %v550, %v560
        %v564 = vadd.f32 %v551, %v560
        %v565 = vadd.f32 %v552, %v560
        %v566 = vadd.f32 %v553, %v560
        %v567 = vadd.f32 %v554, %v560
        %v568 = vadd.f32 %v555, %v560
        %v569 = vld [vmem:[%s5] sm:$0xff]
        %v570 = vld [vmem:[%s5 + $0x8] sm:$0xff]
        %v571 = vld [vmem:[%s5 + $0x10] sm:$0xff]
        %v572 = vld [vmem:[%s5 + $0x18] sm:$0xff]
        %v574 = vsel %vm421, %v561, 0
        %v577 = vsel %vm421, %v562, 0
        %v580 = vsel %vm421, %v563, 0
        %v583 = vsel %vm421, %v564, 0
        %v586 = vsel %vm421, %v565, 0
        %v589 = vsel %vm421, %v566, 0
        %v592 = vsel %vm421, %v567, 0
        %v595 = vsel %vm421, %v568, 0
        %597 = vmatprep.subr.mxu0 0.0
        %598 = vmatpush1.msra.mxu0 %v569
        %599 = vmatprep.subr.mxu0 0.0
        %600 = vmatpush1.msra.mxu0 %v570
        %601 = vmatprep.subr.mxu0 0.0
        %602 = vmatpush1.msra.mxu0 %v571
        %603 = vmatprep.subr.mxu0 0.0
        %604 = vmatpush1.msra.mxu0 %v572
        %605 = vmatprep.subr.mxu0 0.0
        %606 = vmatpush1.msra.mxu0 0.0
        %607 = vmatprep.subr.mxu0 0.0
        %608 = vmatpush1.msra.mxu0 0.0
        %609 = vmatprep.subr.mxu0 0.0
        %610 = vmatpush1.msra.mxu0 0.0
        %611 = vmatprep.subr.mxu0 0.0
        %612 = vmatpush1.msra.mxu0 0.0
        %613 = vmatprep.subr.mxu0 0.0
        %614 = vmatpush1.msra.mxu0 0.0
        %615 = vmatprep.subr.mxu0 0.0
        %616 = vmatpush1.msra.mxu0 0.0
        %617 = vmatprep.subr.mxu0 0.0
        %618 = vmatpush1.msra.mxu0 0.0
        %619 = vmatprep.subr.mxu0 0.0
        %620 = vmatpush1.msra.mxu0 0.0
        %621 = vmatprep.subr.mxu0 0.0
        %622 = vmatpush1.msra.mxu0 0.0
        %623 = vmatprep.subr.mxu0 0.0
        %624 = vmatpush1.msra.mxu0 0.0
        %625 = vmatprep.subr.mxu0 0.0
        %626 = vmatpush1.msra.mxu0 0.0
        %627 = vmatprep.subr.mxu0 0.0
        %628 = vmatpush1.msra.mxu0 0.0
        %629 = vmatprep.subr.mxu0 0.0
        %630 = vmatpush1.msra.mxu0 0.0
        %631 = vmatprep.subr.mxu0 0.0
        %632 = vmatpush1.msra.mxu0 0.0
        %633 = vmatprep.subr.mxu0 0.0
        %634 = vmatpush1.msra.mxu0 0.0
        %635 = vmatprep.subr.mxu0 0.0
        %636 = vmatpush1.msra.mxu0 0.0
        %637 = vmatprep.subr.mxu0 0.0
        %638 = vmatpush1.msra.mxu0 0.0
        %639 = vmatprep.subr.mxu0 0.0
        %640 = vmatpush1.msra.mxu0 0.0
        %641 = vmatprep.subr.mxu0 0.0
        %642 = vmatpush1.msra.mxu0 0.0
        %643 = vmatprep.subr.mxu0 0.0
        %644 = vmatpush1.msra.mxu0 0.0
        %645 = vmatprep.subr.mxu0 0.0
        %646 = vmatpush1.msra.mxu0 0.0
        %647 = vmatprep.subr.mxu0 0.0
        %648 = vmatpush1.msra.mxu0 0.0
        %649 = vmatprep.subr.mxu0 0.0
        %650 = vmatpush1.msra.mxu0 0.0
        %651 = vmatprep.subr.mxu0 0.0
        %652 = vmatpush1.msra.mxu0 0.0
        %653 = vmatprep.subr.mxu0 0.0
        %654 = vmatpush1.msra.mxu0 0.0
        %655 = vmatprep.subr.mxu0 0.0
        %656 = vmatpush1.msra.mxu0 0.0
        %657 = vmatprep.subr.mxu0 0.0
        %658 = vmatpush1.msra.mxu0 0.0
        %659 = vmatprep.subr.mxu0 0.0
        %660 = vmatpush1.msra.mxu0 0.0
        %661 = vmatprep.mubr.f32.mxu0 0.0
        %662 = vmatmul.mubr.f32.gmra.mrb[0].mxu0 %v574
        %v663 = vpop.f32.mrb[0].mxu0
        %v664 = vadd.f32 0.0, %v663
        %v665 = vpop.f32.mrb[0].mxu0
        %666 = vmatprep.mubr.f32.mxu0 0.0
        %667 = vmatmul.mubr.f32.gmra.mrb[0].mxu0 %v577
        %v668 = vpop.f32.mrb[0].mxu0
        %v669 = vadd.f32 0.0, %v668
        %v670 = vpop.f32.mrb[0].mxu0
        %671 = vmatprep.mubr.f32.mxu0 0.0
        %672 = vmatmul.mubr.f32.gmra.mrb[0].mxu0 %v580
        %v673 = vpop.f32.mrb[0].mxu0
        %v674 = vadd.f32 0.0, %v673
        %v675 = vpop.f32.mrb[0].mxu0
        %676 = vmatprep.mubr.f32.mxu0 0.0
        %677 = vmatmul.mubr.f32.gmra.mrb[0].mxu0 %v583
        %v678 = vpop.f32.mrb[0].mxu0
        %v679 = vadd.f32 0.0, %v678
        %v680 = vpop.f32.mrb[0].mxu0
        %681 = vmatprep.mubr.f32.mxu0 0.0
        %682 = vmatmul.mubr.f32.gmra.mrb[0].mxu0 %v586
        %v683 = vpop.f32.mrb[0].mxu0
        %v684 = vadd.f32 0.0, %v683
        %v685 = vpop.f32.mrb[0].mxu0
        %686 = vmatprep.mubr.f32.mxu0 0.0
        %687 = vmatmul.mubr.f32.gmra.mrb[0].mxu0 %v589
        %v688 = vpop.f32.mrb[0].mxu0
        %v689 = vadd.f32 0.0, %v688
        %v690 = vpop.f32.mrb[0].mxu0
        %691 = vmatprep.mubr.f32.mxu0 0.0
        %692 = vmatmul.mubr.f32.gmra.mrb[0].mxu0 %v592
        %v693 = vpop.f32.mrb[0].mxu0
        %v694 = vadd.f32 0.0, %v693
        %v695 = vpop.f32.mrb[0].mxu0
        %696 = vmatprep.mubr.f32.mxu0 0.0
        %697 = vmatmul.mubr.f32.gmra.mrb[0].mxu0 %v595
        %v698 = vpop.f32.mrb[0].mxu0
        %v699 = vadd.f32 0.0, %v698
        %v700 = vpop.f32.mrb[0].mxu0
        %701 = vdwg.mxu0
        %710 = vrot.lane.b32.xlu0 %v664, 96
        %v711 = vpop.permute.xlu0 %710
        %712 = vrot.lane.b32.xlu0 %v669, 96
        %v713 = vpop.permute.xlu0 %712
        %714 = vrot.lane.b32.xlu0 %v674, 96
        %v715 = vpop.permute.xlu0 %714
        %716 = vrot.lane.b32.xlu0 %v679, 96
        %v717 = vpop.permute.xlu0 %716
        %718 = vrot.lane.b32.xlu0 %v684, 96
        %v719 = vpop.permute.xlu0 %718
        %720 = vrot.lane.b32.xlu0 %v689, 96
        %v721 = vpop.permute.xlu0 %720
        %722 = vrot.lane.b32.xlu0 %v694, 96
        %v723 = vpop.permute.xlu0 %722
        %724 = vrot.lane.b32.xlu0 %v699, 96
        %v725 = vpop.permute.xlu0 %724
        %vm734 = vcmask 523264
        %v736 = vsel %vm734, %v381, 0
        %v739 = vsel %vm734, %v382, 0
        %v742 = vsel %vm734, %v383, 0
        %v745 = vsel %vm734, %v384, 0
        %v748 = vsel %vm734, %v385, 0
        %v751 = vsel %vm734, %v386, 0
        %v754 = vsel %vm734, %v387, 0
        %v757 = vsel %vm734, %v388, 0
        %v760 = vsel %vm734, %v389, 0
        %v763 = vsel %vm734, %v390, 0
        %v766 = vsel %vm734, %v391, 0
        %v769 = vsel %vm734, %v392, 0
        %v772 = vsel %vm734, %v393, 0
        %v775 = vsel %vm734, %v394, 0
        %v778 = vsel %vm734, %v395, 0
        %v781 = vsel %vm734, %v396, 0
        %783 = vmatprep.subr.mxu0 0.0
        %784 = vmatpush1.msra.mxu0 %v711
        %785 = vmatprep.subr.mxu0 0.0
        %786 = vmatpush1.msra.mxu0 %v713
        %787 = vmatprep.subr.mxu0 0.0
        %788 = vmatpush1.msra.mxu0 %v715
        %789 = vmatprep.subr.mxu0 0.0
        %790 = vmatpush1.msra.mxu0 %v717
        %791 = vmatprep.subr.mxu0 0.0
        %792 = vmatpush1.msra.mxu0 %v719
        %793 = vmatprep.subr.mxu0 0.0
        %794 = vmatpush1.msra.mxu0 %v721
        %795 = vmatprep.subr.mxu0 0.0
        %796 = vmatpush1.msra.mxu0 %v723
        %797 = vmatprep.subr.mxu0 0.0
        %798 = vmatpush1.msra.mxu0 %v725
        %799 = vmatprep.subr.mxu0 0.0
        %800 = vmatpush1.msra.mxu0 0.0
        %801 = vmatprep.subr.mxu0 0.0
        %802 = vmatpush1.msra.mxu0 0.0
        %803 = vmatprep.subr.mxu0 0.0
        %804 = vmatpush1.msra.mxu0 0.0
        %805 = vmatprep.subr.mxu0 0.0
        %806 = vmatpush1.msra.mxu0 0.0
        %807 = vmatprep.subr.mxu0 0.0
        %808 = vmatpush1.msra.mxu0 0.0
        %809 = vmatprep.subr.mxu0 0.0
        %810 = vmatpush1.msra.mxu0 0.0
        %811 = vmatprep.subr.mxu0 0.0
        %812 = vmatpush1.msra.mxu0 0.0
        %813 = vmatprep.subr.mxu0 0.0
        %814 = vmatpush1.msra.mxu0 0.0
        %815 = vmatprep.subr.mxu0 0.0
        %816 = vmatpush1.msra.mxu0 0.0
        %817 = vmatprep.subr.mxu0 0.0
        %818 = vmatpush1.msra.mxu0 0.0
        %819 = vmatprep.subr.mxu0 0.0
        %820 = vmatpush1.msra.mxu0 0.0
        %821 = vmatprep.subr.mxu0 0.0
        %822 = vmatpush1.msra.mxu0 0.0
        %823 = vmatprep.subr.mxu0 0.0
        %824 = vmatpush1.msra.mxu0 0.0
        %825 = vmatprep.subr.mxu0 0.0
        %826 = vmatpush1.msra.mxu0 0.0
        %827 = vmatprep.subr.mxu0 0.0
        %828 = vmatpush1.msra.mxu0 0.0
        %829 = vmatprep.subr.mxu0 0.0
        %830 = vmatpush1.msra.mxu0 0.0
        %831 = vmatprep.subr.mxu0 0.0
        %832 = vmatpush1.msra.mxu0 0.0
        %833 = vmatprep.subr.mxu0 0.0
        %834 = vmatpush1.msra.mxu0 0.0
        %835 = vmatprep.subr.mxu0 0.0
        %836 = vmatpush1.msra.mxu0 0.0
        %837 = vmatprep.subr.mxu0 0.0
        %838 = vmatpush1.msra.mxu0 0.0
        %839 = vmatprep.subr.mxu0 0.0
        %840 = vmatpush1.msra.mxu0 0.0
        %841 = vmatprep.subr.mxu0 0.0
        %842 = vmatpush1.msra.mxu0 0.0
        %843 = vmatprep.subr.mxu0 0.0
        %844 = vmatpush1.msra.mxu0 0.0
        %845 = vmatprep.subr.mxu0 0.0
        %846 = vmatpush1.msra.mxu0 0.0
        %847 = vmatprep.mubr.f32.mxu0 0.0
        %848 = vmatmul.mubr.f32.gmra.mrb[0].mxu0 %v736
        %v849 = vpop.f32.mrb[0].mxu0
        %v850 = vadd.f32 0.0, %v849
        %v851 = vpop.f32.mrb[0].mxu0
        %852 = vmatprep.mubr.f32.mxu0 0.0
        %853 = vmatmul.mubr.f32.gmra.mrb[0].mxu0 %v739
        %v854 = vpop.f32.mrb[0].mxu0
        %v855 = vadd.f32 0.0, %v854
        %v856 = vpop.f32.mrb[0].mxu0
        %857 = vmatprep.mubr.f32.mxu0 0.0
        %858 = vmatmul.mubr.f32.gmra.mrb[0].mxu0 %v742
        %v859 = vpop.f32.mrb[0].mxu0
        %v860 = vadd.f32 0.0, %v859
        %v861 = vpop.f32.mrb[0].mxu0
        %862 = vmatprep.mubr.f32.mxu0 0.0
        %863 = vmatmul.mubr.f32.gmra.mrb[0].mxu0 %v745
        %v864 = vpop.f32.mrb[0].mxu0
        %v865 = vadd.f32 0.0, %v864
        %v866 = vpop.f32.mrb[0].mxu0
        %867 = vmatprep.mubr.f32.mxu0 0.0
        %868 = vmatmul.mubr.f32.gmra.mrb[0].mxu0 %v748
        %v869 = vpop.f32.mrb[0].mxu0
        %v870 = vadd.f32 0.0, %v869
        %v871 = vpop.f32.mrb[0].mxu0
        %872 = vmatprep.mubr.f32.mxu0 0.0
        %873 = vmatmul.mubr.f32.gmra.mrb[0].mxu0 %v751
        %v874 = vpop.f32.mrb[0].mxu0
        %v875 = vadd.f32 0.0, %v874
        %v876 = vpop.f32.mrb[0].mxu0
        %877 = vmatprep.mubr.f32.mxu0 0.0
        %878 = vmatmul.mubr.f32.gmra.mrb[0].mxu0 %v754
        %v879 = vpop.f32.mrb[0].mxu0
        %v880 = vadd.f32 0.0, %v879
        %v881 = vpop.f32.mrb[0].mxu0
        %882 = vmatprep.mubr.f32.mxu0 0.0
        %883 = vmatmul.mubr.f32.gmra.mrb[0].mxu0 %v757
        %v884 = vpop.f32.mrb[0].mxu0
        %v885 = vadd.f32 0.0, %v884
        %v886 = vpop.f32.mrb[0].mxu0
        %887 = vmatprep.mubr.f32.mxu0 0.0
        %888 = vmatmul.mubr.f32.gmra.mrb[0].mxu0 %v760
        %v889 = vpop.f32.mrb[0].mxu0
        %v890 = vadd.f32 0.0, %v889
        %v891 = vpop.f32.mrb[0].mxu0
        %892 = vmatprep.mubr.f32.mxu0 0.0
        %893 = vmatmul.mubr.f32.gmra.mrb[0].mxu0 %v763
        %v894 = vpop.f32.mrb[0].mxu0
        %v895 = vadd.f32 0.0, %v894
        %v896 = vpop.f32.mrb[0].mxu0
        %897 = vmatprep.mubr.f32.mxu0 0.0
        %898 = vmatmul.mubr.f32.gmra.mrb[0].mxu0 %v766
        %v899 = vpop.f32.mrb[0].mxu0
        %v900 = vadd.f32 0.0, %v899
        %v901 = vpop.f32.mrb[0].mxu0
        %902 = vmatprep.mubr.f32.mxu0 0.0
        %903 = vmatmul.mubr.f32.gmra.mrb[0].mxu0 %v769
        %v904 = vpop.f32.mrb[0].mxu0
        %v905 = vadd.f32 0.0, %v904
        %v906 = vpop.f32.mrb[0].mxu0
        %907 = vmatprep.mubr.f32.mxu0 0.0
        %908 = vmatmul.mubr.f32.gmra.mrb[0].mxu0 %v772
        %v909 = vpop.f32.mrb[0].mxu0
        %v910 = vadd.f32 0.0, %v909
        %v911 = vpop.f32.mrb[0].mxu0
        %912 = vmatprep.mubr.f32.mxu0 0.0
        %913 = vmatmul.mubr.f32.gmra.mrb[0].mxu0 %v775
        %v914 = vpop.f32.mrb[0].mxu0
        %v915 = vadd.f32 0.0, %v914
        %v916 = vpop.f32.mrb[0].mxu0
        %917 = vmatprep.mubr.f32.mxu0 0.0
        %918 = vmatmul.mubr.f32.gmra.mrb[0].mxu0 %v778
        %v919 = vpop.f32.mrb[0].mxu0
        %v920 = vadd.f32 0.0, %v919
        %v921 = vpop.f32.mrb[0].mxu0
        %922 = vmatprep.mubr.f32.mxu0 0.0
        %923 = vmatmul.mubr.f32.gmra.mrb[0].mxu0 %v781
        %v924 = vpop.f32.mrb[0].mxu0
        %v925 = vadd.f32 0.0, %v924
        %v926 = vpop.f32.mrb[0].mxu0
        %927 = vdwg.mxu0
        %v929 = vsel %vm734, %v397, 0
        %v932 = vsel %vm734, %v398, 0
        %v935 = vsel %vm734, %v399, 0
        %v938 = vsel %vm734, %v400, 0
        %v941 = vsel %vm734, %v401, 0
        %v944 = vsel %vm734, %v402, 0
        %v947 = vsel %vm734, %v403, 0
        %v950 = vsel %vm734, %v404, 0
        %v953 = vsel %vm734, %v405, 0
        %v956 = vsel %vm734, %v406, 0
        %v959 = vsel %vm734, %v407, 0
        %v962 = vsel %vm734, %v408, 0
        %v965 = vsel %vm734, %v409, 0
        %v968 = vsel %vm734, %v410, 0
        %v971 = vsel %vm734, %v411, 0
        %v974 = vsel %vm734, %v412, 0
        %976 = vmatprep.subr.mxu0 0.0
        %977 = vmatpush1.msra.mxu0 %v664
        %978 = vmatprep.subr.mxu0 0.0
        %979 = vmatpush1.msra.mxu0 %v669
        %980 = vmatprep.subr.mxu0 0.0
        %981 = vmatpush1.msra.mxu0 %v674
        %982 = vmatprep.subr.mxu0 0.0
        %983 = vmatpush1.msra.mxu0 %v679
        %984 = vmatprep.subr.mxu0 0.0
        %985 = vmatpush1.msra.mxu0 %v684
        %986 = vmatprep.subr.mxu0 0.0
        %987 = vmatpush1.msra.mxu0 %v689
        %988 = vmatprep.subr.mxu0 0.0
        %989 = vmatpush1.msra.mxu0 %v694
        %990 = vmatprep.subr.mxu0 0.0
        %991 = vmatpush1.msra.mxu0 %v699
        %992 = vmatprep.subr.mxu0 0.0
        %993 = vmatpush1.msra.mxu0 0.0
        %994 = vmatprep.subr.mxu0 0.0
        %995 = vmatpush1.msra.mxu0 0.0
        %996 = vmatprep.subr.mxu0 0.0
        %997 = vmatpush1.msra.mxu0 0.0
        %998 = vmatprep.subr.mxu0 0.0
        %999 = vmatpush1.msra.mxu0 0.0
        %1000 = vmatprep.subr.mxu0 0.0
        %1001 = vmatpush1.msra.mxu0 0.0
        %1002 = vmatprep.subr.mxu0 0.0
        %1003 = vmatpush1.msra.mxu0 0.0
        %1004 = vmatprep.subr.mxu0 0.0
        %1005 = vmatpush1.msra.mxu0 0.0
        %1006 = vmatprep.subr.mxu0 0.0
        %1007 = vmatpush1.msra.mxu0 0.0
        %1008 = vmatprep.subr.mxu0 0.0
        %1009 = vmatpush1.msra.mxu0 0.0
        %1010 = vmatprep.subr.mxu0 0.0
        %1011 = vmatpush1.msra.mxu0 0.0
        %1012 = vmatprep.subr.mxu0 0.0
        %1013 = vmatpush1.msra.mxu0 0.0
        %1014 = vmatprep.subr.mxu0 0.0
        %1015 = vmatpush1.msra.mxu0 0.0
        %1016 = vmatprep.subr.mxu0 0.0
        %1017 = vmatpush1.msra.mxu0 0.0
        %1018 = vmatprep.subr.mxu0 0.0
        %1019 = vmatpush1.msra.mxu0 0.0
        %1020 = vmatprep.subr.mxu0 0.0
        %1021 = vmatpush1.msra.mxu0 0.0
        %1022 = vmatprep.subr.mxu0 0.0
        %1023 = vmatpush1.msra.mxu0 0.0
        %1024 = vmatprep.subr.mxu0 0.0
        %1025 = vmatpush1.msra.mxu0 0.0
        %1026 = vmatprep.subr.mxu0 0.0
        %1027 = vmatpush1.msra.mxu0 0.0
        %1028 = vmatprep.subr.mxu0 0.0
        %1029 = vmatpush1.msra.mxu0 0.0
        %1030 = vmatprep.subr.mxu0 0.0
        %1031 = vmatpush1.msra.mxu0 0.0
        %1032 = vmatprep.subr.mxu0 0.0
        %1033 = vmatpush1.msra.mxu0 0.0
        %1034 = vmatprep.subr.mxu0 0.0
        %1035 = vmatpush1.msra.mxu0 0.0
        %1036 = vmatprep.subr.mxu0 0.0
        %1037 = vmatpush1.msra.mxu0 0.0
        %1038 = vmatprep.subr.mxu0 0.0
        %1039 = vmatpush1.msra.mxu0 0.0
        %1040 = vmatprep.mubr.f32.mxu0 0.0
        %1041 = vmatmul.mubr.f32.gmra.mrb[0].mxu0 %v929
        %v1042 = vpop.f32.mrb[0].mxu0
        %v1043 = vadd.f32 %v850, %v1042
        %v1044 = vpop.f32.mrb[0].mxu0
        %1045 = vmatprep.mubr.f32.mxu0 0.0
        %1046 = vmatmul.mubr.f32.gmra.mrb[0].mxu0 %v932
        %v1047 = vpop.f32.mrb[0].mxu0
        %v1048 = vadd.f32 %v855, %v1047
        %v1049 = vpop.f32.mrb[0].mxu0
        %1050 = vmatprep.mubr.f32.mxu0 0.0
        %1051 = vmatmul.mubr.f32.gmra.mrb[0].mxu0 %v935
        %v1052 = vpop.f32.mrb[0].mxu0
        %v1053 = vadd.f32 %v860, %v1052
        %v1054 = vpop.f32.mrb[0].mxu0
        %1055 = vmatprep.mubr.f32.mxu0 0.0
        %1056 = vmatmul.mubr.f32.gmra.mrb[0].mxu0 %v938
        %v1057 = vpop.f32.mrb[0].mxu0
        %v1058 = vadd.f32 %v865, %v1057
        %v1059 = vpop.f32.mrb[0].mxu0
        %1060 = vmatprep.mubr.f32.mxu0 0.0
        %1061 = vmatmul.mubr.f32.gmra.mrb[0].mxu0 %v941
        %v1062 = vpop.f32.mrb[0].mxu0
        %v1063 = vadd.f32 %v870, %v1062
        %v1064 = vpop.f32.mrb[0].mxu0
        %1065 = vmatprep.mubr.f32.mxu0 0.0
        %1066 = vmatmul.mubr.f32.gmra.mrb[0].mxu0 %v944
        %v1067 = vpop.f32.mrb[0].mxu0
        %v1068 = vadd.f32 %v875, %v1067
        %v1069 = vpop.f32.mrb[0].mxu0
        %1070 = vmatprep.mubr.f32.mxu0 0.0
        %1071 = vmatmul.mubr.f32.gmra.mrb[0].mxu0 %v947
        %v1072 = vpop.f32.mrb[0].mxu0
        %v1073 = vadd.f32 %v880, %v1072
        %v1074 = vpop.f32.mrb[0].mxu0
        %1075 = vmatprep.mubr.f32.mxu0 0.0
        %1076 = vmatmul.mubr.f32.gmra.mrb[0].mxu0 %v950
        %v1077 = vpop.f32.mrb[0].mxu0
        %v1078 = vadd.f32 %v885, %v1077
        %v1079 = vpop.f32.mrb[0].mxu0
        %1080 = vmatprep.mubr.f32.mxu0 0.0
        %1081 = vmatmul.mubr.f32.gmra.mrb[0].mxu0 %v953
        %v1082 = vpop.f32.mrb[0].mxu0
        %v1083 = vadd.f32 %v890, %v1082
        %v1084 = vpop.f32.mrb[0].mxu0
        %1085 = vmatprep.mubr.f32.mxu0 0.0
        %1086 = vmatmul.mubr.f32.gmra.mrb[0].mxu0 %v956
        %v1087 = vpop.f32.mrb[0].mxu0
        %v1088 = vadd.f32 %v895, %v1087
        %v1089 = vpop.f32.mrb[0].mxu0
        %1090 = vmatprep.mubr.f32.mxu0 0.0
        %1091 = vmatmul.mubr.f32.gmra.mrb[0].mxu0 %v959
        %v1092 = vpop.f32.mrb[0].mxu0
        %v1093 = vadd.f32 %v900, %v1092
        %v1094 = vpop.f32.mrb[0].mxu0
        %1095 = vmatprep.mubr.f32.mxu0 0.0
        %1096 = vmatmul.mubr.f32.gmra.mrb[0].mxu0 %v962
        %v1097 = vpop.f32.mrb[0].mxu0
        %v1098 = vadd.f32 %v905, %v1097
        %v1099 = vpop.f32.mrb[0].mxu0
        %1100 = vmatprep.mubr.f32.mxu0 0.0
        %1101 = vmatmul.mubr.f32.gmra.mrb[0].mxu0 %v965
        %v1102 = vpop.f32.mrb[0].mxu0
        %v1103 = vadd.f32 %v910, %v1102
        %v1104 = vpop.f32.mrb[0].mxu0
        %1105 = vmatprep.mubr.f32.mxu0 0.0
        %1106 = vmatmul.mubr.f32.gmra.mrb[0].mxu0 %v968
        %v1107 = vpop.f32.mrb[0].mxu0
        %v1108 = vadd.f32 %v915, %v1107
        %v1109 = vpop.f32.mrb[0].mxu0
        %1110 = vmatprep.mubr.f32.mxu0 0.0
        %1111 = vmatmul.mubr.f32.gmra.mrb[0].mxu0 %v971
        %v1112 = vpop.f32.mrb[0].mxu0
        %v1113 = vadd.f32 %v920, %v1112
        %v1114 = vpop.f32.mrb[0].mxu0
        %1115 = vmatprep.mubr.f32.mxu0 0.0
        %1116 = vmatmul.mubr.f32.gmra.mrb[0].mxu0 %v974
        %v1117 = vpop.f32.mrb[0].mxu0
        %v1118 = vadd.f32 %v925, %v1117
        %v1119 = vpop.f32.mrb[0].mxu0
        %1120 = vdwg.mxu0
        %v1121 = vld [vmem:[%s7 + $0x2] sm:$0x1]
        %v1122 = vlaneseq
        %v1123 = vshrl.u32 %v1122, 7
        %v1124 = vsub.s32 0, %v1123
        %v1125 = vrot.slane %v1121, %v1124
        %v1126 = vadd.f32 %v1043, %v1125
        %v1127 = vadd.f32 %v1048, %v1125
        %v1128 = vadd.f32 %v1053, %v1125
        %v1129 = vadd.f32 %v1058, %v1125
        %v1130 = vadd.f32 %v1063, %v1125
        %v1131 = vadd.f32 %v1068, %v1125
        %v1132 = vadd.f32 %v1073, %v1125
        %v1133 = vadd.f32 %v1078, %v1125
        %v1134 = vadd.f32 %v1083, %v1125
        %v1135 = vadd.f32 %v1088, %v1125
        %v1136 = vadd.f32 %v1093, %v1125
        %v1137 = vadd.f32 %v1098, %v1125
        %v1138 = vadd.f32 %v1103, %v1125
        %v1139 = vadd.f32 %v1108, %v1125
        %v1140 = vadd.f32 %v1113, %v1125
        %v1141 = vadd.f32 %v1118, %v1125
        %v1142 = vmax.f32 %v1126, 0.0
        %v1143 = vmax.f32 %v1127, 0.0
        %v1144 = vmax.f32 %v1128, 0.0
        %v1145 = vmax.f32 %v1129, 0.0
        %v1146 = vmax.f32 %v1130, 0.0
        %v1147 = vmax.f32 %v1131, 0.0
        %v1148 = vmax.f32 %v1132, 0.0
        %v1149 = vmax.f32 %v1133, 0.0
        %v1150 = vmax.f32 %v1134, 0.0
        %v1151 = vmax.f32 %v1135, 0.0
        %v1152 = vmax.f32 %v1136, 0.0
        %v1153 = vmax.f32 %v1137, 0.0
        %v1154 = vmax.f32 %v1138, 0.0
        %v1155 = vmax.f32 %v1139, 0.0
        %v1156 = vmax.f32 %v1140, 0.0
        %v1157 = vmax.f32 %v1141, 0.0
        %v1158 = vld [vmem:[#allocation5] sm:$0xff]
        %v1159 = vld [vmem:[#allocation5 + $0x8] sm:$0xff]
        %v1160 = vld [vmem:[#allocation5 + $0x10] sm:$0xff]
        %v1161 = vld [vmem:[#allocation5 + $0x18] sm:$0xff]
        %v1162 = vld [vmem:[%s7 + $0x3] sm:$0x1]
        %v1163 = vlaneseq
        %v1164 = vshrl.u32 %v1163, 7
        %v1165 = vsub.s32 0, %v1164
        %v1166 = vrot.slane %v1162, %v1165
        %v1168 = vsel %vm421, %v1142, 0
        %v1171 = vsel %vm421, %v1143, 0
        %v1174 = vsel %vm421, %v1144, 0
        %v1177 = vsel %vm421, %v1145, 0
        %v1180 = vsel %vm421, %v1146, 0
        %v1183 = vsel %vm421, %v1147, 0
        %v1186 = vsel %vm421, %v1148, 0
        %v1189 = vsel %vm421, %v1149, 0
        %v1192 = vsel %vm421, %v1150, 0
        %v1195 = vsel %vm421, %v1151, 0
        %v1198 = vsel %vm421, %v1152, 0
        %v1201 = vsel %vm421, %v1153, 0
        %v1204 = vsel %vm421, %v1154, 0
        %v1207 = vsel %vm421, %v1155, 0
        %v1210 = vsel %vm421, %v1156, 0
        %v1213 = vsel %vm421, %v1157, 0
        %1215 = vmatprep.subr.mxu0 0.0
        %1216 = vmatpush1.msra.mxu0 %v1158
        %1217 = vmatprep.subr.mxu0 0.0
        %1218 = vmatpush1.msra.mxu0 %v1159
        %1219 = vmatprep.subr.mxu0 0.0
        %1220 = vmatpush1.msra.mxu0 %v1160
        %1221 = vmatprep.subr.mxu0 0.0
        %1222 = vmatpush1.msra.mxu0 %v1161
        %1223 = vmatprep.subr.mxu0 0.0
        %1224 = vmatpush1.msra.mxu0 0.0
        %1225 = vmatprep.subr.mxu0 0.0
        %1226 = vmatpush1.msra.mxu0 0.0
        %1227 = vmatprep.subr.mxu0 0.0
        %1228 = vmatpush1.msra.mxu0 0.0
        %1229 = vmatprep.subr.mxu0 0.0
        %1230 = vmatpush1.msra.mxu0 0.0
        %1231 = vmatprep.subr.mxu0 0.0
        %1232 = vmatpush1.msra.mxu0 0.0
        %1233 = vmatprep.subr.mxu0 0.0
        %1234 = vmatpush1.msra.mxu0 0.0
        %1235 = vmatprep.subr.mxu0 0.0
        %1236 = vmatpush1.msra.mxu0 0.0
        %1237 = vmatprep.subr.mxu0 0.0
        %1238 = vmatpush1.msra.mxu0 0.0
        %1239 = vmatprep.subr.mxu0 0.0
        %1240 = vmatpush1.msra.mxu0 0.0
        %1241 = vmatprep.subr.mxu0 0.0
        %1242 = vmatpush1.msra.mxu0 0.0
        %1243 = vmatprep.subr.mxu0 0.0
        %1244 = vmatpush1.msra.mxu0 0.0
        %1245 = vmatprep.subr.mxu0 0.0
        %1246 = vmatpush1.msra.mxu0 0.0
        %1247 = vmatprep.subr.mxu0 0.0
        %1248 = vmatpush1.msra.mxu0 0.0
        %1249 = vmatprep.subr.mxu0 0.0
        %1250 = vmatpush1.msra.mxu0 0.0
        %1251 = vmatprep.subr.mxu0 0.0
        %1252 = vmatpush1.msra.mxu0 0.0
        %1253 = vmatprep.subr.mxu0 0.0
        %1254 = vmatpush1.msra.mxu0 0.0
        %1255 = vmatprep.subr.mxu0 0.0
        %1256 = vmatpush1.msra.mxu0 0.0
        %1257 = vmatprep.subr.mxu0 0.0
        %1258 = vmatpush1.msra.mxu0 0.0
        %1259 = vmatprep.subr.mxu0 0.0
        %1260 = vmatpush1.msra.mxu0 0.0
        %1261 = vmatprep.subr.mxu0 0.0
        %1262 = vmatpush1.msra.mxu0 0.0
        %1263 = vmatprep.subr.mxu0 0.0
        %1264 = vmatpush1.msra.mxu0 0.0
        %1265 = vmatprep.subr.mxu0 0.0
        %1266 = vmatpush1.msra.mxu0 0.0
        %1267 = vmatprep.subr.mxu0 0.0
        %1268 = vmatpush1.msra.mxu0 0.0
        %1269 = vmatprep.subr.mxu0 0.0
        %1270 = vmatpush1.msra.mxu0 0.0
        %1271 = vmatprep.subr.mxu0 0.0
        %1272 = vmatpush1.msra.mxu0 0.0
        %1273 = vmatprep.subr.mxu0 0.0
        %1274 = vmatpush1.msra.mxu0 0.0
        %1275 = vmatprep.subr.mxu0 0.0
        %1276 = vmatpush1.msra.mxu0 0.0
        %1277 = vmatprep.subr.mxu0 0.0
        %1278 = vmatpush1.msra.mxu0 0.0
        %1279 = vmatprep.mubr.f32.mxu0 0.0
        %1280 = vmatmul.mubr.f32.gmra.mrb[0].mxu0 %v1168
        %v1281 = vpop.f32.mrb[0].mxu0
        %v1282 = vadd.f32 %v1166, %v1281
        %v1283 = vpop.f32.mrb[0].mxu0
        %1284 = vmatprep.mubr.f32.mxu0 0.0
        %1285 = vmatmul.mubr.f32.gmra.mrb[0].mxu0 %v1171
        %v1286 = vpop.f32.mrb[0].mxu0
        %v1287 = vadd.f32 %v1166, %v1286
        %v1288 = vpop.f32.mrb[0].mxu0
        %1289 = vmatprep.mubr.f32.mxu0 0.0
        %1290 = vmatmul.mubr.f32.gmra.mrb[0].mxu0 %v1174
        %v1291 = vpop.f32.mrb[0].mxu0
        %v1292 = vadd.f32 %v1166, %v1291
        %v1293 = vpop.f32.mrb[0].mxu0
        %1294 = vmatprep.mubr.f32.mxu0 0.0
        %1295 = vmatmul.mubr.f32.gmra.mrb[0].mxu0 %v1177
        %v1296 = vpop.f32.mrb[0].mxu0
        %v1297 = vadd.f32 %v1166, %v1296
        %v1298 = vpop.f32.mrb[0].mxu0
        %1299 = vmatprep.mubr.f32.mxu0 0.0
        %1300 = vmatmul.mubr.f32.gmra.mrb[0].mxu0 %v1180
        %v1301 = vpop.f32.mrb[0].mxu0
        %v1302 = vadd.f32 %v1166, %v1301
        %v1303 = vpop.f32.mrb[0].mxu0
        %1304 = vmatprep.mubr.f32.mxu0 0.0
        %1305 = vmatmul.mubr.f32.gmra.mrb[0].mxu0 %v1183
        %v1306 = vpop.f32.mrb[0].mxu0
        %v1307 = vadd.f32 %v1166, %v1306
        %v1308 = vpop.f32.mrb[0].mxu0
        %1309 = vmatprep.mubr.f32.mxu0 0.0
        %1310 = vmatmul.mubr.f32.gmra.mrb[0].mxu0 %v1186
        %v1311 = vpop.f32.mrb[0].mxu0
        %v1312 = vadd.f32 %v1166, %v1311
        %v1313 = vpop.f32.mrb[0].mxu0
        %1314 = vmatprep.mubr.f32.mxu0 0.0
        %1315 = vmatmul.mubr.f32.gmra.mrb[0].mxu0 %v1189
        %v1316 = vpop.f32.mrb[0].mxu0
        %v1317 = vadd.f32 %v1166, %v1316
        %v1318 = vpop.f32.mrb[0].mxu0
        %1319 = vmatprep.mubr.f32.mxu0 0.0
        %1320 = vmatmul.mubr.f32.gmra.mrb[0].mxu0 %v1192
        %v1321 = vpop.f32.mrb[0].mxu0
        %v1322 = vadd.f32 %v1166, %v1321
        %v1323 = vpop.f32.mrb[0].mxu0
        %1324 = vmatprep.mubr.f32.mxu0 0.0
        %1325 = vmatmul.mubr.f32.gmra.mrb[0].mxu0 %v1195
        %v1326 = vpop.f32.mrb[0].mxu0
        %v1327 = vadd.f32 %v1166, %v1326
        %v1328 = vpop.f32.mrb[0].mxu0
        %1329 = vmatprep.mubr.f32.mxu0 0.0
        %1330 = vmatmul.mubr.f32.gmra.mrb[0].mxu0 %v1198
        %v1331 = vpop.f32.mrb[0].mxu0
        %v1332 = vadd.f32 %v1166, %v1331
        %v1333 = vpop.f32.mrb[0].mxu0
        %1334 = vmatprep.mubr.f32.mxu0 0.0
        %1335 = vmatmul.mubr.f32.gmra.mrb[0].mxu0 %v1201
        %v1336 = vpop.f32.mrb[0].mxu0
        %v1337 = vadd.f32 %v1166, %v1336
        %v1338 = vpop.f32.mrb[0].mxu0
        %1339 = vmatprep.mubr.f32.mxu0 0.0
        %1340 = vmatmul.mubr.f32.gmra.mrb[0].mxu0 %v1204
        %v1341 = vpop.f32.mrb[0].mxu0
        %v1342 = vadd.f32 %v1166, %v1341
        %v1343 = vpop.f32.mrb[0].mxu0
        %1344 = vmatprep.mubr.f32.mxu0 0.0
        %1345 = vmatmul.mubr.f32.gmra.mrb[0].mxu0 %v1207
        %v1346 = vpop.f32.mrb[0].mxu0
        %v1347 = vadd.f32 %v1166, %v1346
        %v1348 = vpop.f32.mrb[0].mxu0
        %1349 = vmatprep.mubr.f32.mxu0 0.0
        %1350 = vmatmul.mubr.f32.gmra.mrb[0].mxu0 %v1210
        %v1351 = vpop.f32.mrb[0].mxu0
        %v1352 = vadd.f32 %v1166, %v1351
        %v1353 = vpop.f32.mrb[0].mxu0
        %1354 = vmatprep.mubr.f32.mxu0 0.0
        %1355 = vmatmul.mubr.f32.gmra.mrb[0].mxu0 %v1213
        %v1356 = vpop.f32.mrb[0].mxu0
        %v1357 = vadd.f32 %v1166, %v1356
        %v1358 = vpop.f32.mrb[0].mxu0
        %1359 = vdwg.mxu0
        %v1360 = vmax.f32 %v1282, 0.0
        %v1361 = vmax.f32 %v1287, 0.0
        %v1362 = vmax.f32 %v1292, 0.0
        %v1363 = vmax.f32 %v1297, 0.0
        %v1364 = vmax.f32 %v1302, 0.0
        %v1365 = vmax.f32 %v1307, 0.0
        %v1366 = vmax.f32 %v1312, 0.0
        %v1367 = vmax.f32 %v1317, 0.0
        %v1368 = vmax.f32 %v1322, 0.0
        %v1369 = vmax.f32 %v1327, 0.0
        %v1370 = vmax.f32 %v1332, 0.0
        %v1371 = vmax.f32 %v1337, 0.0
        %v1372 = vmax.f32 %v1342, 0.0
        %v1373 = vmax.f32 %v1347, 0.0
        %v1374 = vmax.f32 %v1352, 0.0
        %v1375 = vmax.f32 %v1357, 0.0
        %1376 = vmatprep.subr.mxu0 0.0
        %1377 = vmatpush1.msra.mxu0 %v1360
        %1378 = vmatprep.subr.mxu0 0.0
        %1379 = vmatpush1.msra.mxu0 %v1361
        %1380 = vmatprep.subr.mxu0 0.0
        %1381 = vmatpush1.msra.mxu0 %v1362
        %1382 = vmatprep.subr.mxu0 0.0
        %1383 = vmatpush1.msra.mxu0 %v1363
        %1384 = vmatprep.subr.mxu0 0.0
        %1385 = vmatpush1.msra.mxu0 %v1364
        %1386 = vmatprep.subr.mxu0 0.0
        %1387 = vmatpush1.msra.mxu0 %v1365
        %1388 = vmatprep.subr.mxu0 0.0
        %1389 = vmatpush1.msra.mxu0 %v1366
        %1390 = vmatprep.subr.mxu0 0.0
        %1391 = vmatpush1.msra.mxu0 %v1367
        %1392 = vmatprep.subr.mxu0 0.0
        %1393 = vmatpush1.msra.mxu0 %v1368
        %1394 = vmatprep.subr.mxu0 0.0
        %1395 = vmatpush1.msra.mxu0 %v1369
        %1396 = vmatprep.subr.mxu0 0.0
        %1397 = vmatpush1.msra.mxu0 %v1370
        %1398 = vmatprep.subr.mxu0 0.0
        %1399 = vmatpush1.msra.mxu0 %v1371
        %1400 = vmatprep.subr.mxu0 0.0
        %1401 = vmatpush1.msra.mxu0 %v1372
        %1402 = vmatprep.subr.mxu0 0.0
        %1403 = vmatpush1.msra.mxu0 %v1373
        %1404 = vmatprep.subr.mxu0 0.0
        %1405 = vmatpush1.msra.mxu0 %v1374
        %1406 = vmatprep.subr.mxu0 0.0
        %1407 = vmatpush1.msra.mxu0 %v1375
        %1408 = vmatprep.subr.mxu0 0.0
        %1409 = vmatpush1.msra.mxu0 0.0
        %1410 = vmatprep.subr.mxu0 0.0
        %1411 = vmatpush1.msra.mxu0 0.0
        %1412 = vmatprep.subr.mxu0 0.0
        %1413 = vmatpush1.msra.mxu0 0.0
        %1414 = vmatprep.subr.mxu0 0.0
        %1415 = vmatpush1.msra.mxu0 0.0
        %1416 = vmatprep.subr.mxu0 0.0
        %1417 = vmatpush1.msra.mxu0 0.0
        %1418 = vmatprep.subr.mxu0 0.0
        %1419 = vmatpush1.msra.mxu0 0.0
        %1420 = vmatprep.subr.mxu0 0.0
        %1421 = vmatpush1.msra.mxu0 0.0
        %1422 = vmatprep.subr.mxu0 0.0
        %1423 = vmatpush1.msra.mxu0 0.0
        %1424 = vmatprep.subr.mxu0 0.0
        %1425 = vmatpush1.msra.mxu0 0.0
        %1426 = vmatprep.subr.mxu0 0.0
        %1427 = vmatpush1.msra.mxu0 0.0
        %1428 = vmatprep.subr.mxu0 0.0
        %1429 = vmatpush1.msra.mxu0 0.0
        %1430 = vmatprep.subr.mxu0 0.0
        %1431 = vmatpush1.msra.mxu0 0.0
        %1432 = vmatprep.subr.mxu0 0.0
        %1433 = vmatpush1.msra.mxu0 0.0
        %1434 = vmatprep.subr.mxu0 0.0
        %1435 = vmatpush1.msra.mxu0 0.0
        %1436 = vmatprep.subr.mxu0 0.0
        %1437 = vmatpush1.msra.mxu0 0.0
        %1438 = vmatprep.subr.mxu0 0.0
        %1439 = vmatpush1.msra.mxu0 0.0
        %1440 = vmatprep.mubr.f32.mxu0 0.0
        %1441 = vmatmul.mubr.f32.gmra.mrb[0].mxu0 %v413
        %v1442 = vpop.f32.mrb[0].mxu0
        %v1443 = vadd.f32 0.0, %v1442
        %v1444 = vpop.f32.mrb[0].mxu0
        %1445 = vmatprep.mubr.f32.mxu0 0.0
        %1446 = vmatmul.mubr.f32.gmra.mrb[0].mxu0 %v414
        %v1447 = vpop.f32.mrb[0].mxu0
        %v1448 = vadd.f32 0.0, %v1447
        %v1449 = vpop.f32.mrb[0].mxu0
        %1450 = vmatprep.mubr.f32.mxu0 0.0
        %1451 = vmatmul.mubr.f32.gmra.mrb[0].mxu0 %v415
        %v1452 = vpop.f32.mrb[0].mxu0
        %v1453 = vadd.f32 0.0, %v1452
        %v1454 = vpop.f32.mrb[0].mxu0
        %1455 = vmatprep.mubr.f32.mxu0 0.0
        %1456 = vmatmul.mubr.f32.gmra.mrb[0].mxu0 %v416
        %v1457 = vpop.f32.mrb[0].mxu0
        %v1458 = vadd.f32 0.0, %v1457
        %v1459 = vpop.f32.mrb[0].mxu0
        %1460 = vmatprep.mubr.f32.mxu0 0.0
        %1461 = vmatmul.mubr.f32.gmra.mrb[0].mxu0 %v417
        %v1462 = vpop.f32.mrb[0].mxu0
        %v1463 = vadd.f32 0.0, %v1462
        %v1464 = vpop.f32.mrb[0].mxu0
        %1465 = vmatprep.mubr.f32.mxu0 0.0
        %1466 = vmatmul.mubr.f32.gmra.mrb[0].mxu0 %v418
        %v1467 = vpop.f32.mrb[0].mxu0
        %v1468 = vadd.f32 0.0, %v1467
        %v1469 = vpop.f32.mrb[0].mxu0
        %1470 = vmatprep.mubr.f32.mxu0 0.0
        %1471 = vmatmul.mubr.f32.gmra.mrb[0].mxu0 %v419
        %v1472 = vpop.f32.mrb[0].mxu0
        %v1473 = vadd.f32 0.0, %v1472
        %v1474 = vpop.f32.mrb[0].mxu0
        %1475 = vmatprep.mubr.f32.mxu0 0.0
        %1476 = vmatmul.mubr.f32.gmra.mrb[0].mxu0 %v420
        %v1477 = vpop.f32.mrb[0].mxu0
        %v1478 = vadd.f32 0.0, %v1477
        %v1479 = vpop.f32.mrb[0].mxu0
        %1480 = vdwg.mxu0
        %s1481 = scalar_lea.vmem %s5, 32
        %v1482 = vld [vmem:[%s1481] sm:$0xff]
        %v1483 = vld [vmem:[%s1481 + $0x8] sm:$0xff]
        %v1484 = vld [vmem:[%s1481 + $0x10] sm:$0xff]
        %v1485 = vld [vmem:[%s1481 + $0x18] sm:$0xff]
        %v1486 = vld [vmem:[%s7 + $0x4] sm:$0x1]
        %v1487 = vlaneseq
        %v1488 = vshrl.u32 %v1487, 7
        %v1489 = vsub.s32 0, %v1488
        %v1490 = vrot.slane %v1486, %v1489
        %v1492 = vsel %vm421, %v1443, 0
        %v1495 = vsel %vm421, %v1448, 0
        %v1498 = vsel %vm421, %v1453, 0
        %v1501 = vsel %vm421, %v1458, 0
        %v1504 = vsel %vm421, %v1463, 0
        %v1507 = vsel %vm421, %v1468, 0
        %v1510 = vsel %vm421, %v1473, 0
        %v1513 = vsel %vm421, %v1478, 0
        %1515 = vmatprep.subr.mxu0 0.0
        %1516 = vmatpush1.msra.mxu0 %v1482
        %1517 = vmatprep.subr.mxu0 0.0
        %1518 = vmatpush1.msra.mxu0 %v1483
        %1519 = vmatprep.subr.mxu0 0.0
        %1520 = vmatpush1.msra.mxu0 %v1484
        %1521 = vmatprep.subr.mxu0 0.0
        %1522 = vmatpush1.msra.mxu0 %v1485
        %1523 = vmatprep.subr.mxu0 0.0
        %1524 = vmatpush1.msra.mxu0 0.0
        %1525 = vmatprep.subr.mxu0 0.0
        %1526 = vmatpush1.msra.mxu0 0.0
        %1527 = vmatprep.subr.mxu0 0.0
        %1528 = vmatpush1.msra.mxu0 0.0
        %1529 = vmatprep.subr.mxu0 0.0
        %1530 = vmatpush1.msra.mxu0 0.0
        %1531 = vmatprep.subr.mxu0 0.0
        %1532 = vmatpush1.msra.mxu0 0.0
        %1533 = vmatprep.subr.mxu0 0.0
        %1534 = vmatpush1.msra.mxu0 0.0
        %1535 = vmatprep.subr.mxu0 0.0
        %1536 = vmatpush1.msra.mxu0 0.0
        %1537 = vmatprep.subr.mxu0 0.0
        %1538 = vmatpush1.msra.mxu0 0.0
        %1539 = vmatprep.subr.mxu0 0.0
        %1540 = vmatpush1.msra.mxu0 0.0
        %1541 = vmatprep.subr.mxu0 0.0
        %1542 = vmatpush1.msra.mxu0 0.0
        %1543 = vmatprep.subr.mxu0 0.0
        %1544 = vmatpush1.msra.mxu0 0.0
        %1545 = vmatprep.subr.mxu0 0.0
        %1546 = vmatpush1.msra.mxu0 0.0
        %1547 = vmatprep.subr.mxu0 0.0
        %1548 = vmatpush1.msra.mxu0 0.0
        %1549 = vmatprep.subr.mxu0 0.0
        %1550 = vmatpush1.msra.mxu0 0.0
        %1551 = vmatprep.subr.mxu0 0.0
        %1552 = vmatpush1.msra.mxu0 0.0
        %1553 = vmatprep.subr.mxu0 0.0
        %1554 = vmatpush1.msra.mxu0 0.0
        %1555 = vmatprep.subr.mxu0 0.0
        %1556 = vmatpush1.msra.mxu0 0.0
        %1557 = vmatprep.subr.mxu0 0.0
        %1558 = vmatpush1.msra.mxu0 0.0
        %1559 = vmatprep.subr.mxu0 0.0
        %1560 = vmatpush1.msra.mxu0 0.0
        %1561 = vmatprep.subr.mxu0 0.0
        %1562 = vmatpush1.msra.mxu0 0.0
        %1563 = vmatprep.subr.mxu0 0.0
        %1564 = vmatpush1.msra.mxu0 0.0
        %1565 = vmatprep.subr.mxu0 0.0
        %1566 = vmatpush1.msra.mxu0 0.0
        %1567 = vmatprep.subr.mxu0 0.0
        %1568 = vmatpush1.msra.mxu0 0.0
        %1569 = vmatprep.subr.mxu0 0.0
        %1570 = vmatpush1.msra.mxu0 0.0
        %1571 = vmatprep.subr.mxu0 0.0
        %1572 = vmatpush1.msra.mxu0 0.0
        %1573 = vmatprep.subr.mxu0 0.0
        %1574 = vmatpush1.msra.mxu0 0.0
        %1575 = vmatprep.subr.mxu0 0.0
        %1576 = vmatpush1.msra.mxu0 0.0
        %1577 = vmatprep.subr.mxu0 0.0
        %1578 = vmatpush1.msra.mxu0 0.0
        %1579 = vmatprep.mubr.f32.mxu0 0.0
        %1580 = vmatmul.mubr.f32.gmra.mrb[0].mxu0 %v1492
        %v1581 = vpop.f32.mrb[0].mxu0
        %v1582 = vadd.f32 %v1490, %v1581
        %v1583 = vpop.f32.mrb[0].mxu0
        %1584 = vmatprep.mubr.f32.mxu0 0.0
        %1585 = vmatmul.mubr.f32.gmra.mrb[0].mxu0 %v1495
        %v1586 = vpop.f32.mrb[0].mxu0
        %v1587 = vadd.f32 %v1490, %v1586
        %v1588 = vpop.f32.mrb[0].mxu0
        %1589 = vmatprep.mubr.f32.mxu0 0.0
        %1590 = vmatmul.mubr.f32.gmra.mrb[0].mxu0 %v1498
        %v1591 = vpop.f32.mrb[0].mxu0
        %v1592 = vadd.f32 %v1490, %v1591
        %v1593 = vpop.f32.mrb[0].mxu0
        %1594 = vmatprep.mubr.f32.mxu0 0.0
        %1595 = vmatmul.mubr.f32.gmra.mrb[0].mxu0 %v1501
        %v1596 = vpop.f32.mrb[0].mxu0
        %v1597 = vadd.f32 %v1490, %v1596
        %v1598 = vpop.f32.mrb[0].mxu0
        %1599 = vmatprep.mubr.f32.mxu0 0.0
        %1600 = vmatmul.mubr.f32.gmra.mrb[0].mxu0 %v1504
        %v1601 = vpop.f32.mrb[0].mxu0
        %v1602 = vadd.f32 %v1490, %v1601
        %v1603 = vpop.f32.mrb[0].mxu0
        %1604 = vmatprep.mubr.f32.mxu0 0.0
        %1605 = vmatmul.mubr.f32.gmra.mrb[0].mxu0 %v1507
        %v1606 = vpop.f32.mrb[0].mxu0
        %v1607 = vadd.f32 %v1490, %v1606
        %v1608 = vpop.f32.mrb[0].mxu0
        %1609 = vmatprep.mubr.f32.mxu0 0.0
        %1610 = vmatmul.mubr.f32.gmra.mrb[0].mxu0 %v1510
        %v1611 = vpop.f32.mrb[0].mxu0
        %v1612 = vadd.f32 %v1490, %v1611
        %v1613 = vpop.f32.mrb[0].mxu0
        %1614 = vmatprep.mubr.f32.mxu0 0.0
        %1615 = vmatmul.mubr.f32.gmra.mrb[0].mxu0 %v1513
        %v1616 = vpop.f32.mrb[0].mxu0
        %v1617 = vadd.f32 %v1490, %v1616
        %v1618 = vpop.f32.mrb[0].mxu0
        %1619 = vdwg.mxu0
        %v1620 = vmul.f32 %v1582, 0.5
        %v1621 = vmul.f32 %v1587, 0.5
        %v1622 = vmul.f32 %v1592, 0.5
        %v1623 = vmul.f32 %v1597, 0.5
        %v1624 = vmul.f32 %v1602, 0.5
        %v1625 = vmul.f32 %v1607, 0.5
        %v1626 = vmul.f32 %v1612, 0.5
        %v1627 = vmul.f32 %v1617, 0.5
        %v1628 = vmul.f32 %v1620, 1.442695
        %v1629 = vpow.pop %v1628
        %v1630 = vmul.f32 %v1621, 1.442695
        %v1631 = vpow.pop %v1630
        %v1632 = vmul.f32 %v1622, 1.442695
        %v1633 = vpow.pop %v1632
        %v1634 = vmul.f32 %v1623, 1.442695
        %v1635 = vpow.pop %v1634
        %v1636 = vmul.f32 %v1624, 1.442695
        %v1637 = vpow.pop %v1636
        %v1638 = vmul.f32 %v1625, 1.442695
        %v1639 = vpow.pop %v1638
        %v1640 = vmul.f32 %v1626, 1.442695
        %v1641 = vpow.pop %v1640
        %v1642 = vmul.f32 %v1627, 1.442695
        %v1643 = vpow.pop %v1642
        %1652 = vrot.lane.b32.xlu0 %v1629, 96
        %v1653 = vpop.permute.xlu0 %1652
        %1654 = vrot.lane.b32.xlu0 %v1631, 96
        %v1655 = vpop.permute.xlu0 %1654
        %1656 = vrot.lane.b32.xlu0 %v1633, 96
        %v1657 = vpop.permute.xlu0 %1656
        %1658 = vrot.lane.b32.xlu0 %v1635, 96
        %v1659 = vpop.permute.xlu0 %1658
        %1660 = vrot.lane.b32.xlu0 %v1637, 96
        %v1661 = vpop.permute.xlu0 %1660
        %1662 = vrot.lane.b32.xlu0 %v1639, 96
        %v1663 = vpop.permute.xlu0 %1662
        %1664 = vrot.lane.b32.xlu0 %v1641, 96
        %v1665 = vpop.permute.xlu0 %1664
        %1666 = vrot.lane.b32.xlu0 %v1643, 96
        %v1667 = vpop.permute.xlu0 %1666
        %v1676 = vmul.f32 %v373, %v1653
        %v1677 = vmul.f32 %v374, %v1655
        %v1678 = vmul.f32 %v375, %v1657
        %v1679 = vmul.f32 %v376, %v1659
        %v1680 = vmul.f32 %v377, %v1661
        %v1681 = vmul.f32 %v378, %v1663
        %v1682 = vmul.f32 %v379, %v1665
        %v1683 = vmul.f32 %v380, %v1667
        %v1684 = vadd.f32 %v1582, %v1676
        %v1685 = vadd.f32 %v1587, %v1677
        %v1686 = vadd.f32 %v1592, %v1678
        %v1687 = vadd.f32 %v1597, %v1679
        %v1688 = vadd.f32 %v1602, %v1680
        %v1689 = vadd.f32 %v1607, %v1681
        %v1690 = vadd.f32 %v1612, %v1682
        %v1691 = vadd.f32 %v1617, %v1683
        %s1692 = scalar_lea.vmem %s5, 64
        %v1693 = vld [vmem:[%s1692] sm:$0xff]
        %v1694 = vld [vmem:[%s1692 + $0x8] sm:$0xff]
        %v1695 = vld [vmem:[%s1692 + $0x10] sm:$0xff]
        %v1696 = vld [vmem:[%s1692 + $0x18] sm:$0xff]
        %v1698 = vsel %vm421, %v1684, 0
        %v1701 = vsel %vm421, %v1685, 0
        %v1704 = vsel %vm421, %v1686, 0
        %v1707 = vsel %vm421, %v1687, 0
        %v1710 = vsel %vm421, %v1688, 0
        %v1713 = vsel %vm421, %v1689, 0
        %v1716 = vsel %vm421, %v1690, 0
        %v1719 = vsel %vm421, %v1691, 0
        %1721 = vmatprep.subr.mxu0 0.0
        %1722 = vmatpush1.msra.mxu0 %v1693
        %1723 = vmatprep.subr.mxu0 0.0
        %1724 = vmatpush1.msra.mxu0 %v1694
        %1725 = vmatprep.subr.mxu0 0.0
        %1726 = vmatpush1.msra.mxu0 %v1695
        %1727 = vmatprep.subr.mxu0 0.0
        %1728 = vmatpush1.msra.mxu0 %v1696
        %1729 = vmatprep.subr.mxu0 0.0
        %1730 = vmatpush1.msra.mxu0 0.0
        %1731 = vmatprep.subr.mxu0 0.0
        %1732 = vmatpush1.msra.mxu0 0.0
        %1733 = vmatprep.subr.mxu0 0.0
        %1734 = vmatpush1.msra.mxu0 0.0
        %1735 = vmatprep.subr.mxu0 0.0
        %1736 = vmatpush1.msra.mxu0 0.0
        %1737 = vmatprep.subr.mxu0 0.0
        %1738 = vmatpush1.msra.mxu0 0.0
        %1739 = vmatprep.subr.mxu0 0.0
        %1740 = vmatpush1.msra.mxu0 0.0
        %1741 = vmatprep.subr.mxu0 0.0
        %1742 = vmatpush1.msra.mxu0 0.0
        %1743 = vmatprep.subr.mxu0 0.0
        %1744 = vmatpush1.msra.mxu0 0.0
        %1745 = vmatprep.subr.mxu0 0.0
        %1746 = vmatpush1.msra.mxu0 0.0
        %1747 = vmatprep.subr.mxu0 0.0
        %1748 = vmatpush1.msra.mxu0 0.0
        %1749 = vmatprep.subr.mxu0 0.0
        %1750 = vmatpush1.msra.mxu0 0.0
        %1751 = vmatprep.subr.mxu0 0.0
        %1752 = vmatpush1.msra.mxu0 0.0
        %1753 = vmatprep.subr.mxu0 0.0
        %1754 = vmatpush1.msra.mxu0 0.0
        %1755 = vmatprep.subr.mxu0 0.0
        %1756 = vmatpush1.msra.mxu0 0.0
        %1757 = vmatprep.subr.mxu0 0.0
        %1758 = vmatpush1.msra.mxu0 0.0
        %1759 = vmatprep.subr.mxu0 0.0
        %1760 = vmatpush1.msra.mxu0 0.0
        %1761 = vmatprep.subr.mxu0 0.0
        %1762 = vmatpush1.msra.mxu0 0.0
        %1763 = vmatprep.subr.mxu0 0.0
        %1764 = vmatpush1.msra.mxu0 0.0
        %1765 = vmatprep.subr.mxu0 0.0
        %1766 = vmatpush1.msra.mxu0 0.0
        %1767 = vmatprep.subr.mxu0 0.0
        %1768 = vmatpush1.msra.mxu0 0.0
        %1769 = vmatprep.subr.mxu0 0.0
        %1770 = vmatpush1.msra.mxu0 0.0
        %1771 = vmatprep.subr.mxu0 0.0
        %1772 = vmatpush1.msra.mxu0 0.0
        %1773 = vmatprep.subr.mxu0 0.0
        %1774 = vmatpush1.msra.mxu0 0.0
        %1775 = vmatprep.subr.mxu0 0.0
        %1776 = vmatpush1.msra.mxu0 0.0
        %1777 = vmatprep.subr.mxu0 0.0
        %1778 = vmatpush1.msra.mxu0 0.0
        %1779 = vmatprep.subr.mxu0 0.0
        %1780 = vmatpush1.msra.mxu0 0.0
        %1781 = vmatprep.subr.mxu0 0.0
        %1782 = vmatpush1.msra.mxu0 0.0
        %1783 = vmatprep.subr.mxu0 0.0
        %1784 = vmatpush1.msra.mxu0 0.0
        %1785 = vmatprep.mubr.f32.mxu0 0.0
        %1786 = vmatmul.mubr.f32.gmra.mrb[0].mxu0 %v1698
        %v1787 = vpop.f32.mrb[0].mxu0
        %v1788 = vadd.f32 0.0, %v1787
        %v1789 = vpop.f32.mrb[0].mxu0
        %1790 = vmatprep.mubr.f32.mxu0 0.0
        %1791 = vmatmul.mubr.f32.gmra.mrb[0].mxu0 %v1701
        %v1792 = vpop.f32.mrb[0].mxu0
        %v1793 = vadd.f32 0.0, %v1792
        %v1794 = vpop.f32.mrb[0].mxu0
        %1795 = vmatprep.mubr.f32.mxu0 0.0
        %1796 = vmatmul.mubr.f32.gmra.mrb[0].mxu0 %v1704
        %v1797 = vpop.f32.mrb[0].mxu0
        %v1798 = vadd.f32 0.0, %v1797
        %v1799 = vpop.f32.mrb[0].mxu0
        %1800 = vmatprep.mubr.f32.mxu0 0.0
        %1801 = vmatmul.mubr.f32.gmra.mrb[0].mxu0 %v1707
        %v1802 = vpop.f32.mrb[0].mxu0
        %v1803 = vadd.f32 0.0, %v1802
        %v1804 = vpop.f32.mrb[0].mxu0
        %1805 = vmatprep.mubr.f32.mxu0 0.0
        %1806 = vmatmul.mubr.f32.gmra.mrb[0].mxu0 %v1710
        %v1807 = vpop.f32.mrb[0].mxu0
        %v1808 = vadd.f32 0.0, %v1807
        %v1809 = vpop.f32.mrb[0].mxu0
        %1810 = vmatprep.mubr.f32.mxu0 0.0
        %1811 = vmatmul.mubr.f32.gmra.mrb[0].mxu0 %v1713
        %v1812 = vpop.f32.mrb[0].mxu0
        %v1813 = vadd.f32 0.0, %v1812
        %v1814 = vpop.f32.mrb[0].mxu0
        %1815 = vmatprep.mubr.f32.mxu0 0.0
        %1816 = vmatmul.mubr.f32.gmra.mrb[0].mxu0 %v1716
        %v1817 = vpop.f32.mrb[0].mxu0
        %v1818 = vadd.f32 0.0, %v1817
        %v1819 = vpop.f32.mrb[0].mxu0
        %1820 = vmatprep.mubr.f32.mxu0 0.0
        %1821 = vmatmul.mubr.f32.gmra.mrb[0].mxu0 %v1719
        %v1822 = vpop.f32.mrb[0].mxu0
        %v1823 = vadd.f32 0.0, %v1822
        %v1824 = vpop.f32.mrb[0].mxu0
        %1825 = vdwg.mxu0
        %1834 = vrot.lane.b32.xlu0 %v1788, 96
        %v1835 = vpop.permute.xlu0 %1834
        %1836 = vrot.lane.b32.xlu0 %v1793, 96
        %v1837 = vpop.permute.xlu0 %1836
        %1838 = vrot.lane.b32.xlu0 %v1798, 96
        %v1839 = vpop.permute.xlu0 %1838
        %1840 = vrot.lane.b32.xlu0 %v1803, 96
        %v1841 = vpop.permute.xlu0 %1840
        %1842 = vrot.lane.b32.xlu0 %v1808, 96
        %v1843 = vpop.permute.xlu0 %1842
        %1844 = vrot.lane.b32.xlu0 %v1813, 96
        %v1845 = vpop.permute.xlu0 %1844
        %1846 = vrot.lane.b32.xlu0 %v1818, 96
        %v1847 = vpop.permute.xlu0 %1846
        %1848 = vrot.lane.b32.xlu0 %v1823, 96
        %v1849 = vpop.permute.xlu0 %1848
        %1858 = vmatprep.subr.mxu0 0.0
        %1859 = vmatpush1.msra.mxu0 %v1835
        %1860 = vmatprep.subr.mxu0 0.0
        %1861 = vmatpush1.msra.mxu0 %v1837
        %1862 = vmatprep.subr.mxu0 0.0
        %1863 = vmatpush1.msra.mxu0 %v1839
        %1864 = vmatprep.subr.mxu0 0.0
        %1865 = vmatpush1.msra.mxu0 %v1841
        %1866 = vmatprep.subr.mxu0 0.0
        %1867 = vmatpush1.msra.mxu0 %v1843
        %1868 = vmatprep.subr.mxu0 0.0
        %1869 = vmatpush1.msra.mxu0 %v1845
        %1870 = vmatprep.subr.mxu0 0.0
        %1871 = vmatpush1.msra.mxu0 %v1847
        %1872 = vmatprep.subr.mxu0 0.0
        %1873 = vmatpush1.msra.mxu0 %v1849
        %1874 = vmatprep.subr.mxu0 0.0
        %1875 = vmatpush1.msra.mxu0 0.0
        %1876 = vmatprep.subr.mxu0 0.0
        %1877 = vmatpush1.msra.mxu0 0.0
        %1878 = vmatprep.subr.mxu0 0.0
        %1879 = vmatpush1.msra.mxu0 0.0
        %1880 = vmatprep.subr.mxu0 0.0
        %1881 = vmatpush1.msra.mxu0 0.0
        %1882 = vmatprep.subr.mxu0 0.0
        %1883 = vmatpush1.msra.mxu0 0.0
        %1884 = vmatprep.subr.mxu0 0.0
        %1885 = vmatpush1.msra.mxu0 0.0
        %1886 = vmatprep.subr.mxu0 0.0
        %1887 = vmatpush1.msra.mxu0 0.0
        %1888 = vmatprep.subr.mxu0 0.0
        %1889 = vmatpush1.msra.mxu0 0.0
        %1890 = vmatprep.subr.mxu0 0.0
        %1891 = vmatpush1.msra.mxu0 0.0
        %1892 = vmatprep.subr.mxu0 0.0
        %1893 = vmatpush1.msra.mxu0 0.0
        %1894 = vmatprep.subr.mxu0 0.0
        %1895 = vmatpush1.msra.mxu0 0.0
        %1896 = vmatprep.subr.mxu0 0.0
        %1897 = vmatpush1.msra.mxu0 0.0
        %1898 = vmatprep.subr.mxu0 0.0
        %1899 = vmatpush1.msra.mxu0 0.0
        %1900 = vmatprep.subr.mxu0 0.0
        %1901 = vmatpush1.msra.mxu0 0.0
        %1902 = vmatprep.subr.mxu0 0.0
        %1903 = vmatpush1.msra.mxu0 0.0
        %1904 = vmatprep.subr.mxu0 0.0
        %1905 = vmatpush1.msra.mxu0 0.0
        %1906 = vmatprep.subr.mxu0 0.0
        %1907 = vmatpush1.msra.mxu0 0.0
        %1908 = vmatprep.subr.mxu0 0.0
        %1909 = vmatpush1.msra.mxu0 0.0
        %1910 = vmatprep.subr.mxu0 0.0
        %1911 = vmatpush1.msra.mxu0 0.0
        %1912 = vmatprep.subr.mxu0 0.0
        %1913 = vmatpush1.msra.mxu0 0.0
        %1914 = vmatprep.subr.mxu0 0.0
        %1915 = vmatpush1.msra.mxu0 0.0
        %1916 = vmatprep.subr.mxu0 0.0
        %1917 = vmatpush1.msra.mxu0 0.0
        %1918 = vmatprep.subr.mxu0 0.0
        %1919 = vmatpush1.msra.mxu0 0.0
        %1920 = vmatprep.subr.mxu0 0.0
        %1921 = vmatpush1.msra.mxu0 0.0
        %1922 = vmatprep.mubr.f32.mxu0 0.0
        %1923 = vmatmul.mubr.f32.gmra.mrb[0].mxu0 %v736
        %v1924 = vpop.f32.mrb[0].mxu0
        %v1925 = vadd.f32 0.0, %v1924
        %v1926 = vpop.f32.mrb[0].mxu0
        %1927 = vmatprep.mubr.f32.mxu0 0.0
        %1928 = vmatmul.mubr.f32.gmra.mrb[0].mxu0 %v739
        %v1929 = vpop.f32.mrb[0].mxu0
        %v1930 = vadd.f32 0.0, %v1929
        %v1931 = vpop.f32.mrb[0].mxu0
        %1932 = vmatprep.mubr.f32.mxu0 0.0
        %1933 = vmatmul.mubr.f32.gmra.mrb[0].mxu0 %v742
        %v1934 = vpop.f32.mrb[0].mxu0
        %v1935 = vadd.f32 0.0, %v1934
        %v1936 = vpop.f32.mrb[0].mxu0
        %1937 = vmatprep.mubr.f32.mxu0 0.0
        %1938 = vmatmul.mubr.f32.gmra.mrb[0].mxu0 %v745
        %v1939 = vpop.f32.mrb[0].mxu0
        %v1940 = vadd.f32 0.0, %v1939
        %v1941 = vpop.f32.mrb[0].mxu0
        %1942 = vmatprep.mubr.f32.mxu0 0.0
        %1943 = vmatmul.mubr.f32.gmra.mrb[0].mxu0 %v748
        %v1944 = vpop.f32.mrb[0].mxu0
        %v1945 = vadd.f32 0.0, %v1944
        %v1946 = vpop.f32.mrb[0].mxu0
        %1947 = vmatprep.mubr.f32.mxu0 0.0
        %1948 = vmatmul.mubr.f32.gmra.mrb[0].mxu0 %v751
        %v1949 = vpop.f32.mrb[0].mxu0
        %v1950 = vadd.f32 0.0, %v1949
        %v1951 = vpop.f32.mrb[0].mxu0
        %1952 = vmatprep.mubr.f32.mxu0 0.0
        %1953 = vmatmul.mubr.f32.gmra.mrb[0].mxu0 %v754
        %v1954 = vpop.f32.mrb[0].mxu0
        %v1955 = vadd.f32 0.0, %v1954
        %v1956 = vpop.f32.mrb[0].mxu0
        %1957 = vmatprep.mubr.f32.mxu0 0.0
        %1958 = vmatmul.mubr.f32.gmra.mrb[0].mxu0 %v757
        %v1959 = vpop.f32.mrb[0].mxu0
        %v1960 = vadd.f32 0.0, %v1959
        %v1961 = vpop.f32.mrb[0].mxu0
        %1962 = vmatprep.mubr.f32.mxu0 0.0
        %1963 = vmatmul.mubr.f32.gmra.mrb[0].mxu0 %v760
        %v1964 = vpop.f32.mrb[0].mxu0
        %v1965 = vadd.f32 0.0, %v1964
        %v1966 = vpop.f32.mrb[0].mxu0
        %1967 = vmatprep.mubr.f32.mxu0 0.0
        %1968 = vmatmul.mubr.f32.gmra.mrb[0].mxu0 %v763
        %v1969 = vpop.f32.mrb[0].mxu0
        %v1970 = vadd.f32 0.0, %v1969
        %v1971 = vpop.f32.mrb[0].mxu0
        %1972 = vmatprep.mubr.f32.mxu0 0.0
        %1973 = vmatmul.mubr.f32.gmra.mrb[0].mxu0 %v766
        %v1974 = vpop.f32.mrb[0].mxu0
        %v1975 = vadd.f32 0.0, %v1974
        %v1976 = vpop.f32.mrb[0].mxu0
        %1977 = vmatprep.mubr.f32.mxu0 0.0
        %1978 = vmatmul.mubr.f32.gmra.mrb[0].mxu0 %v769
        %v1979 = vpop.f32.mrb[0].mxu0
        %v1980 = vadd.f32 0.0, %v1979
        %v1981 = vpop.f32.mrb[0].mxu0
        %1982 = vmatprep.mubr.f32.mxu0 0.0
        %1983 = vmatmul.mubr.f32.gmra.mrb[0].mxu0 %v772
        %v1984 = vpop.f32.mrb[0].mxu0
        %v1985 = vadd.f32 0.0, %v1984
        %v1986 = vpop.f32.mrb[0].mxu0
        %1987 = vmatprep.mubr.f32.mxu0 0.0
        %1988 = vmatmul.mubr.f32.gmra.mrb[0].mxu0 %v775
        %v1989 = vpop.f32.mrb[0].mxu0
        %v1990 = vadd.f32 0.0, %v1989
        %v1991 = vpop.f32.mrb[0].mxu0
        %1992 = vmatprep.mubr.f32.mxu0 0.0
        %1993 = vmatmul.mubr.f32.gmra.mrb[0].mxu0 %v778
        %v1994 = vpop.f32.mrb[0].mxu0
        %v1995 = vadd.f32 0.0, %v1994
        %v1996 = vpop.f32.mrb[0].mxu0
        %1997 = vmatprep.mubr.f32.mxu0 0.0
        %1998 = vmatmul.mubr.f32.gmra.mrb[0].mxu0 %v781
        %v1999 = vpop.f32.mrb[0].mxu0
        %v2000 = vadd.f32 0.0, %v1999
        %v2001 = vpop.f32.mrb[0].mxu0
        %2002 = vdwg.mxu0
        %2003 = vmatprep.subr.mxu0 0.0
        %2004 = vmatpush1.msra.mxu0 %v1788
        %2005 = vmatprep.subr.mxu0 0.0
        %2006 = vmatpush1.msra.mxu0 %v1793
        %2007 = vmatprep.subr.mxu0 0.0
        %2008 = vmatpush1.msra.mxu0 %v1798
        %2009 = vmatprep.subr.mxu0 0.0
        %2010 = vmatpush1.msra.mxu0 %v1803
        %2011 = vmatprep.subr.mxu0 0.0
        %2012 = vmatpush1.msra.mxu0 %v1808
        %2013 = vmatprep.subr.mxu0 0.0
        %2014 = vmatpush1.msra.mxu0 %v1813
        %2015 = vmatprep.subr.mxu0 0.0
        %2016 = vmatpush1.msra.mxu0 %v1818
        %2017 = vmatprep.subr.mxu0 0.0
        %2018 = vmatpush1.msra.mxu0 %v1823
        %2019 = vmatprep.subr.mxu0 0.0
        %2020 = vmatpush1.msra.mxu0 0.0
        %2021 = vmatprep.subr.mxu0 0.0
        %2022 = vmatpush1.msra.mxu0 0.0
        %2023 = vmatprep.subr.mxu0 0.0
        %2024 = vmatpush1.msra.mxu0 0.0
        %2025 = vmatprep.subr.mxu0 0.0
        %2026 = vmatpush1.msra.mxu0 0.0
        %2027 = vmatprep.subr.mxu0 0.0
        %2028 = vmatpush1.msra.mxu0 0.0
        %2029 = vmatprep.subr.mxu0 0.0
        %2030 = vmatpush1.msra.mxu0 0.0
        %2031 = vmatprep.subr.mxu0 0.0
        %2032 = vmatpush1.msra.mxu0 0.0
        %2033 = vmatprep.subr.mxu0 0.0
        %2034 = vmatpush1.msra.mxu0 0.0
        %2035 = vmatprep.subr.mxu0 0.0
        %2036 = vmatpush1.msra.mxu0 0.0
        %2037 = vmatprep.subr.mxu0 0.0
        %2038 = vmatpush1.msra.mxu0 0.0
        %2039 = vmatprep.subr.mxu0 0.0
        %2040 = vmatpush1.msra.mxu0 0.0
        %2041 = vmatprep.subr.mxu0 0.0
        %2042 = vmatpush1.msra.mxu0 0.0
        %2043 = vmatprep.subr.mxu0 0.0
        %2044 = vmatpush1.msra.mxu0 0.0
        %2045 = vmatprep.subr.mxu0 0.0
        %2046 = vmatpush1.msra.mxu0 0.0
        %2047 = vmatprep.subr.mxu0 0.0
        %2048 = vmatpush1.msra.mxu0 0.0
        %2049 = vmatprep.subr.mxu0 0.0
        %2050 = vmatpush1.msra.mxu0 0.0
        %2051 = vmatprep.subr.mxu0 0.0
        %2052 = vmatpush1.msra.mxu0 0.0
        %2053 = vmatprep.subr.mxu0 0.0
        %2054 = vmatpush1.msra.mxu0 0.0
        %2055 = vmatprep.subr.mxu0 0.0
        %2056 = vmatpush1.msra.mxu0 0.0
        %2057 = vmatprep.subr.mxu0 0.0
        %2058 = vmatpush1.msra.mxu0 0.0
        %2059 = vmatprep.subr.mxu0 0.0
        %2060 = vmatpush1.msra.mxu0 0.0
        %2061 = vmatprep.subr.mxu0 0.0
        %2062 = vmatpush1.msra.mxu0 0.0
        %2063 = vmatprep.subr.mxu0 0.0
        %2064 = vmatpush1.msra.mxu0 0.0
        %2065 = vmatprep.subr.mxu0 0.0
        %2066 = vmatpush1.msra.mxu0 0.0
        %2067 = vmatprep.mubr.f32.mxu0 0.0
        %2068 = vmatmul.mubr.f32.gmra.mrb[0].mxu0 %v929
        %v2069 = vpop.f32.mrb[0].mxu0
        %v2070 = vadd.f32 %v1925, %v2069
        %v2071 = vpop.f32.mrb[0].mxu0
        %2072 = vmatprep.mubr.f32.mxu0 0.0
        %2073 = vmatmul.mubr.f32.gmra.mrb[0].mxu0 %v932
        %v2074 = vpop.f32.mrb[0].mxu0
        %v2075 = vadd.f32 %v1930, %v2074
        %v2076 = vpop.f32.mrb[0].mxu0
        %2077 = vmatprep.mubr.f32.mxu0 0.0
        %2078 = vmatmul.mubr.f32.gmra.mrb[0].mxu0 %v935
        %v2079 = vpop.f32.mrb[0].mxu0
        %v2080 = vadd.f32 %v1935, %v2079
        %v2081 = vpop.f32.mrb[0].mxu0
        %2082 = vmatprep.mubr.f32.mxu0 0.0
        %2083 = vmatmul.mubr.f32.gmra.mrb[0].mxu0 %v938
        %v2084 = vpop.f32.mrb[0].mxu0
        %v2085 = vadd.f32 %v1940, %v2084
        %v2086 = vpop.f32.mrb[0].mxu0
        %2087 = vmatprep.mubr.f32.mxu0 0.0
        %2088 = vmatmul.mubr.f32.gmra.mrb[0].mxu0 %v941
        %v2089 = vpop.f32.mrb[0].mxu0
        %v2090 = vadd.f32 %v1945, %v2089
        %v2091 = vpop.f32.mrb[0].mxu0
        %2092 = vmatprep.mubr.f32.mxu0 0.0
        %2093 = vmatmul.mubr.f32.gmra.mrb[0].mxu0 %v944
        %v2094 = vpop.f32.mrb[0].mxu0
        %v2095 = vadd.f32 %v1950, %v2094
        %v2096 = vpop.f32.mrb[0].mxu0
        %2097 = vmatprep.mubr.f32.mxu0 0.0
        %2098 = vmatmul.mubr.f32.gmra.mrb[0].mxu0 %v947
        %v2099 = vpop.f32.mrb[0].mxu0
        %v2100 = vadd.f32 %v1955, %v2099
        %v2101 = vpop.f32.mrb[0].mxu0
        %2102 = vmatprep.mubr.f32.mxu0 0.0
        %2103 = vmatmul.mubr.f32.gmra.mrb[0].mxu0 %v950
        %v2104 = vpop.f32.mrb[0].mxu0
        %v2105 = vadd.f32 %v1960, %v2104
        %v2106 = vpop.f32.mrb[0].mxu0
        %2107 = vmatprep.mubr.f32.mxu0 0.0
        %2108 = vmatmul.mubr.f32.gmra.mrb[0].mxu0 %v953
        %v2109 = vpop.f32.mrb[0].mxu0
        %v2110 = vadd.f32 %v1965, %v2109
        %v2111 = vpop.f32.mrb[0].mxu0
        %2112 = vmatprep.mubr.f32.mxu0 0.0
        %2113 = vmatmul.mubr.f32.gmra.mrb[0].mxu0 %v956
        %v2114 = vpop.f32.mrb[0].mxu0
        %v2115 = vadd.f32 %v1970, %v2114
        %v2116 = vpop.f32.mrb[0].mxu0
        %2117 = vmatprep.mubr.f32.mxu0 0.0
        %2118 = vmatmul.mubr.f32.gmra.mrb[0].mxu0 %v959
        %v2119 = vpop.f32.mrb[0].mxu0
        %v2120 = vadd.f32 %v1975, %v2119
        %v2121 = vpop.f32.mrb[0].mxu0
        %2122 = vmatprep.mubr.f32.mxu0 0.0
        %2123 = vmatmul.mubr.f32.gmra.mrb[0].mxu0 %v962
        %v2124 = vpop.f32.mrb[0].mxu0
        %v2125 = vadd.f32 %v1980, %v2124
        %v2126 = vpop.f32.mrb[0].mxu0
        %2127 = vmatprep.mubr.f32.mxu0 0.0
        %2128 = vmatmul.mubr.f32.gmra.mrb[0].mxu0 %v965
        %v2129 = vpop.f32.mrb[0].mxu0
        %v2130 = vadd.f32 %v1985, %v2129
        %v2131 = vpop.f32.mrb[0].mxu0
        %2132 = vmatprep.mubr.f32.mxu0 0.0
        %2133 = vmatmul.mubr.f32.gmra.mrb[0].mxu0 %v968
        %v2134 = vpop.f32.mrb[0].mxu0
        %v2135 = vadd.f32 %v1990, %v2134
        %v2136 = vpop.f32.mrb[0].mxu0
        %2137 = vmatprep.mubr.f32.mxu0 0.0
        %2138 = vmatmul.mubr.f32.gmra.mrb[0].mxu0 %v971
        %v2139 = vpop.f32.mrb[0].mxu0
        %v2140 = vadd.f32 %v1995, %v2139
        %v2141 = vpop.f32.mrb[0].mxu0
        %2142 = vmatprep.mubr.f32.mxu0 0.0
        %2143 = vmatmul.mubr.f32.gmra.mrb[0].mxu0 %v974
        %v2144 = vpop.f32.mrb[0].mxu0
        %v2145 = vadd.f32 %v2000, %v2144
        %v2146 = vpop.f32.mrb[0].mxu0
        %2147 = vdwg.mxu0
        %v2148 = vld [vmem:[%s7 + $0x5] sm:$0x1]
        %v2149 = vlaneseq
        %v2150 = vshrl.u32 %v2149, 7
        %v2151 = vsub.s32 0, %v2150
        %v2152 = vrot.slane %v2148, %v2151
        %v2153 = vadd.f32 %v2070, %v2152
        %v2154 = vadd.f32 %v2075, %v2152
        %v2155 = vadd.f32 %v2080, %v2152
        %v2156 = vadd.f32 %v2085, %v2152
        %v2157 = vadd.f32 %v2090, %v2152
        %v2158 = vadd.f32 %v2095, %v2152
        %v2159 = vadd.f32 %v2100, %v2152
        %v2160 = vadd.f32 %v2105, %v2152
        %v2161 = vadd.f32 %v2110, %v2152
        %v2162 = vadd.f32 %v2115, %v2152
        %v2163 = vadd.f32 %v2120, %v2152
        %v2164 = vadd.f32 %v2125, %v2152
        %v2165 = vadd.f32 %v2130, %v2152
        %v2166 = vadd.f32 %v2135, %v2152
        %v2167 = vadd.f32 %v2140, %v2152
        %v2168 = vadd.f32 %v2145, %v2152
        %v2169 = vmax.f32 %v2153, 0.0
        %v2170 = vmax.f32 %v2154, 0.0
        %v2171 = vmax.f32 %v2155, 0.0
        %v2172 = vmax.f32 %v2156, 0.0
        %v2173 = vmax.f32 %v2157, 0.0
        %v2174 = vmax.f32 %v2158, 0.0
        %v2175 = vmax.f32 %v2159, 0.0
        %v2176 = vmax.f32 %v2160, 0.0
        %v2177 = vmax.f32 %v2161, 0.0
        %v2178 = vmax.f32 %v2162, 0.0
        %v2179 = vmax.f32 %v2163, 0.0
        %v2180 = vmax.f32 %v2164, 0.0
        %v2181 = vmax.f32 %v2165, 0.0
        %v2182 = vmax.f32 %v2166, 0.0
        %v2183 = vmax.f32 %v2167, 0.0
        %v2184 = vmax.f32 %v2168, 0.0
        %s2185 = scalar_lea.vmem [#allocation5], 32
        %v2186 = vld [vmem:[%s2185] sm:$0xff]
        %v2187 = vld [vmem:[%s2185 + $0x8] sm:$0xff]
        %v2188 = vld [vmem:[%s2185 + $0x10] sm:$0xff]
        %v2189 = vld [vmem:[%s2185 + $0x18] sm:$0xff]
        %v2190 = vld [vmem:[%s7 + $0x6] sm:$0x1]
        %v2191 = vlaneseq
        %v2192 = vshrl.u32 %v2191, 7
        %v2193 = vsub.s32 0, %v2192
        %v2194 = vrot.slane %v2190, %v2193
        %v2196 = vsel %vm421, %v2169, 0
        %v2199 = vsel %vm421, %v2170, 0
        %v2202 = vsel %vm421, %v2171, 0
        %v2205 = vsel %vm421, %v2172, 0
        %v2208 = vsel %vm421, %v2173, 0
        %v2211 = vsel %vm421, %v2174, 0
        %v2214 = vsel %vm421, %v2175, 0
        %v2217 = vsel %vm421, %v2176, 0
        %v2220 = vsel %vm421, %v2177, 0
        %v2223 = vsel %vm421, %v2178, 0
        %v2226 = vsel %vm421, %v2179, 0
        %v2229 = vsel %vm421, %v2180, 0
        %v2232 = vsel %vm421, %v2181, 0
        %v2235 = vsel %vm421, %v2182, 0
        %v2238 = vsel %vm421, %v2183, 0
        %v2241 = vsel %vm421, %v2184, 0
        %2243 = vmatprep.subr.mxu0 0.0
        %2244 = vmatpush1.msra.mxu0 %v2186
        %2245 = vmatprep.subr.mxu0 0.0
        %2246 = vmatpush1.msra.mxu0 %v2187
        %2247 = vmatprep.subr.mxu0 0.0
        %2248 = vmatpush1.msra.mxu0 %v2188
        %2249 = vmatprep.subr.mxu0 0.0
        %2250 = vmatpush1.msra.mxu0 %v2189
        %2251 = vmatprep.subr.mxu0 0.0
        %2252 = vmatpush1.msra.mxu0 0.0
        %2253 = vmatprep.subr.mxu0 0.0
        %2254 = vmatpush1.msra.mxu0 0.0
        %2255 = vmatprep.subr.mxu0 0.0
        %2256 = vmatpush1.msra.mxu0 0.0
        %2257 = vmatprep.subr.mxu0 0.0
        %2258 = vmatpush1.msra.mxu0 0.0
        %2259 = vmatprep.subr.mxu0 0.0
        %2260 = vmatpush1.msra.mxu0 0.0
        %2261 = vmatprep.subr.mxu0 0.0
        %2262 = vmatpush1.msra.mxu0 0.0
        %2263 = vmatprep.subr.mxu0 0.0
        %2264 = vmatpush1.msra.mxu0 0.0
        %2265 = vmatprep.subr.mxu0 0.0
        %2266 = vmatpush1.msra.mxu0 0.0
        %2267 = vmatprep.subr.mxu0 0.0
        %2268 = vmatpush1.msra.mxu0 0.0
        %2269 = vmatprep.subr.mxu0 0.0
        %2270 = vmatpush1.msra.mxu0 0.0
        %2271 = vmatprep.subr.mxu0 0.0
        %2272 = vmatpush1.msra.mxu0 0.0
        %2273 = vmatprep.subr.mxu0 0.0
        %2274 = vmatpush1.msra.mxu0 0.0
        %2275 = vmatprep.subr.mxu0 0.0
        %2276 = vmatpush1.msra.mxu0 0.0
        %2277 = vmatprep.subr.mxu0 0.0
        %2278 = vmatpush1.msra.mxu0 0.0
        %2279 = vmatprep.subr.mxu0 0.0
        %2280 = vmatpush1.msra.mxu0 0.0
        %2281 = vmatprep.subr.mxu0 0.0
        %2282 = vmatpush1.msra.mxu0 0.0
        %2283 = vmatprep.subr.mxu0 0.0
        %2284 = vmatpush1.msra.mxu0 0.0
        %2285 = vmatprep.subr.mxu0 0.0
        %2286 = vmatpush1.msra.mxu0 0.0
        %2287 = vmatprep.subr.mxu0 0.0
        %2288 = vmatpush1.msra.mxu0 0.0
        %2289 = vmatprep.subr.mxu0 0.0
        %2290 = vmatpush1.msra.mxu0 0.0
        %2291 = vmatprep.subr.mxu0 0.0
        %2292 = vmatpush1.msra.mxu0 0.0
        %2293 = vmatprep.subr.mxu0 0.0
        %2294 = vmatpush1.msra.mxu0 0.0
        %2295 = vmatprep.subr.mxu0 0.0
        %2296 = vmatpush1.msra.mxu0 0.0
        %2297 = vmatprep.subr.mxu0 0.0
        %2298 = vmatpush1.msra.mxu0 0.0
        %2299 = vmatprep.subr.mxu0 0.0
        %2300 = vmatpush1.msra.mxu0 0.0
        %2301 = vmatprep.subr.mxu0 0.0
        %2302 = vmatpush1.msra.mxu0 0.0
        %2303 = vmatprep.subr.mxu0 0.0
        %2304 = vmatpush1.msra.mxu0 0.0
        %2305 = vmatprep.subr.mxu0 0.0
        %2306 = vmatpush1.msra.mxu0 0.0
        %2307 = vmatprep.mubr.f32.mxu0 0.0
        %2308 = vmatmul.mubr.f32.gmra.mrb[0].mxu0 %v2196
        %v2309 = vpop.f32.mrb[0].mxu0
        %v2310 = vadd.f32 %v2194, %v2309
        %v2311 = vpop.f32.mrb[0].mxu0
        %2312 = vmatprep.mubr.f32.mxu0 0.0
        %2313 = vmatmul.mubr.f32.gmra.mrb[0].mxu0 %v2199
        %v2314 = vpop.f32.mrb[0].mxu0
        %v2315 = vadd.f32 %v2194, %v2314
        %v2316 = vpop.f32.mrb[0].mxu0
        %2317 = vmatprep.mubr.f32.mxu0 0.0
        %2318 = vmatmul.mubr.f32.gmra.mrb[0].mxu0 %v2202
        %v2319 = vpop.f32.mrb[0].mxu0
        %v2320 = vadd.f32 %v2194, %v2319
        %v2321 = vpop.f32.mrb[0].mxu0
        %2322 = vmatprep.mubr.f32.mxu0 0.0
        %2323 = vmatmul.mubr.f32.gmra.mrb[0].mxu0 %v2205
        %v2324 = vpop.f32.mrb[0].mxu0
        %v2325 = vadd.f32 %v2194, %v2324
        %v2326 = vpop.f32.mrb[0].mxu0
        %2327 = vmatprep.mubr.f32.mxu0 0.0
        %2328 = vmatmul.mubr.f32.gmra.mrb[0].mxu0 %v2208
        %v2329 = vpop.f32.mrb[0].mxu0
        %v2330 = vadd.f32 %v2194, %v2329
        %v2331 = vpop.f32.mrb[0].mxu0
        %2332 = vmatprep.mubr.f32.mxu0 0.0
        %2333 = vmatmul.mubr.f32.gmra.mrb[0].mxu0 %v2211
        %v2334 = vpop.f32.mrb[0].mxu0
        %v2335 = vadd.f32 %v2194, %v2334
        %v2336 = vpop.f32.mrb[0].mxu0
        %2337 = vmatprep.mubr.f32.mxu0 0.0
        %2338 = vmatmul.mubr.f32.gmra.mrb[0].mxu0 %v2214
        %v2339 = vpop.f32.mrb[0].mxu0
        %v2340 = vadd.f32 %v2194, %v2339
        %v2341 = vpop.f32.mrb[0].mxu0
        %2342 = vmatprep.mubr.f32.mxu0 0.0
        %2343 = vmatmul.mubr.f32.gmra.mrb[0].mxu0 %v2217
        %v2344 = vpop.f32.mrb[0].mxu0
        %v2345 = vadd.f32 %v2194, %v2344
        %v2346 = vpop.f32.mrb[0].mxu0
        %2347 = vmatprep.mubr.f32.mxu0 0.0
        %2348 = vmatmul.mubr.f32.gmra.mrb[0].mxu0 %v2220
        %v2349 = vpop.f32.mrb[0].mxu0
        %v2350 = vadd.f32 %v2194, %v2349
        %v2351 = vpop.f32.mrb[0].mxu0
        %2352 = vmatprep.mubr.f32.mxu0 0.0
        %2353 = vmatmul.mubr.f32.gmra.mrb[0].mxu0 %v2223
        %v2354 = vpop.f32.mrb[0].mxu0
        %v2355 = vadd.f32 %v2194, %v2354
        %v2356 = vpop.f32.mrb[0].mxu0
        %2357 = vmatprep.mubr.f32.mxu0 0.0
        %2358 = vmatmul.mubr.f32.gmra.mrb[0].mxu0 %v2226
        %v2359 = vpop.f32.mrb[0].mxu0
        %v2360 = vadd.f32 %v2194, %v2359
        %v2361 = vpop.f32.mrb[0].mxu0
        %2362 = vmatprep.mubr.f32.mxu0 0.0
        %2363 = vmatmul.mubr.f32.gmra.mrb[0].mxu0 %v2229
        %v2364 = vpop.f32.mrb[0].mxu0
        %v2365 = vadd.f32 %v2194, %v2364
        %v2366 = vpop.f32.mrb[0].mxu0
        %2367 = vmatprep.mubr.f32.mxu0 0.0
        %2368 = vmatmul.mubr.f32.gmra.mrb[0].mxu0 %v2232
        %v2369 = vpop.f32.mrb[0].mxu0
        %v2370 = vadd.f32 %v2194, %v2369
        %v2371 = vpop.f32.mrb[0].mxu0
        %2372 = vmatprep.mubr.f32.mxu0 0.0
        %2373 = vmatmul.mubr.f32.gmra.mrb[0].mxu0 %v2235
        %v2374 = vpop.f32.mrb[0].mxu0
        %v2375 = vadd.f32 %v2194, %v2374
        %v2376 = vpop.f32.mrb[0].mxu0
        %2377 = vmatprep.mubr.f32.mxu0 0.0
        %2378 = vmatmul.mubr.f32.gmra.mrb[0].mxu0 %v2238
        %v2379 = vpop.f32.mrb[0].mxu0
        %v2380 = vadd.f32 %v2194, %v2379
        %v2381 = vpop.f32.mrb[0].mxu0
        %2382 = vmatprep.mubr.f32.mxu0 0.0
        %2383 = vmatmul.mubr.f32.gmra.mrb[0].mxu0 %v2241
        %v2384 = vpop.f32.mrb[0].mxu0
        %v2385 = vadd.f32 %v2194, %v2384
        %v2386 = vpop.f32.mrb[0].mxu0
        %2387 = vdwg.mxu0
        %v2388 = vmax.f32 %v2310, 0.0
        %v2389 = vmax.f32 %v2315, 0.0
        %v2390 = vmax.f32 %v2320, 0.0
        %v2391 = vmax.f32 %v2325, 0.0
        %v2392 = vmax.f32 %v2330, 0.0
        %v2393 = vmax.f32 %v2335, 0.0
        %v2394 = vmax.f32 %v2340, 0.0
        %v2395 = vmax.f32 %v2345, 0.0
        %v2396 = vmax.f32 %v2350, 0.0
        %v2397 = vmax.f32 %v2355, 0.0
        %v2398 = vmax.f32 %v2360, 0.0
        %v2399 = vmax.f32 %v2365, 0.0
        %v2400 = vmax.f32 %v2370, 0.0
        %v2401 = vmax.f32 %v2375, 0.0
        %v2402 = vmax.f32 %v2380, 0.0
        %v2403 = vmax.f32 %v2385, 0.0
        %s2404 = scalar_lea.vmem [#allocation5], 64
        %v2405 = vld [vmem:[%s2404] sm:$0xff]
        %v2406 = vld [vmem:[%s2404 + $0x8] sm:$0xff]
        %v2407 = vld [vmem:[%s2404 + $0x10] sm:$0xff]
        %v2408 = vld [vmem:[%s2404 + $0x18] sm:$0xff]
        %v2409 = vld [vmem:[%s7 + $0x7] sm:$0x1]
        %v2410 = vlaneseq
        %v2411 = vshrl.u32 %v2410, 7
        %v2412 = vsub.s32 0, %v2411
        %v2413 = vrot.slane %v2409, %v2412
        %v2415 = vsel %vm421, %v2388, 0
        %v2418 = vsel %vm421, %v2389, 0
        %v2421 = vsel %vm421, %v2390, 0
        %v2424 = vsel %vm421, %v2391, 0
        %v2427 = vsel %vm421, %v2392, 0
        %v2430 = vsel %vm421, %v2393, 0
        %v2433 = vsel %vm421, %v2394, 0
        %v2436 = vsel %vm421, %v2395, 0
        %v2439 = vsel %vm421, %v2396, 0
        %v2442 = vsel %vm421, %v2397, 0
        %v2445 = vsel %vm421, %v2398, 0
        %v2448 = vsel %vm421, %v2399, 0
        %v2451 = vsel %vm421, %v2400, 0
        %v2454 = vsel %vm421, %v2401, 0
        %v2457 = vsel %vm421, %v2402, 0
        %v2460 = vsel %vm421, %v2403, 0
        %2462 = vmatprep.subr.mxu0 0.0
        %2463 = vmatpush1.msra.mxu0 %v2405
        %2464 = vmatprep.subr.mxu0 0.0
        %2465 = vmatpush1.msra.mxu0 %v2406
        %2466 = vmatprep.subr.mxu0 0.0
        %2467 = vmatpush1.msra.mxu0 %v2407
        %2468 = vmatprep.subr.mxu0 0.0
        %2469 = vmatpush1.msra.mxu0 %v2408
        %2470 = vmatprep.subr.mxu0 0.0
        %2471 = vmatpush1.msra.mxu0 0.0
        %2472 = vmatprep.subr.mxu0 0.0
        %2473 = vmatpush1.msra.mxu0 0.0
        %2474 = vmatprep.subr.mxu0 0.0
        %2475 = vmatpush1.msra.mxu0 0.0
        %2476 = vmatprep.subr.mxu0 0.0
        %2477 = vmatpush1.msra.mxu0 0.0
        %2478 = vmatprep.subr.mxu0 0.0
        %2479 = vmatpush1.msra.mxu0 0.0
        %2480 = vmatprep.subr.mxu0 0.0
        %2481 = vmatpush1.msra.mxu0 0.0
        %2482 = vmatprep.subr.mxu0 0.0
        %2483 = vmatpush1.msra.mxu0 0.0
        %2484 = vmatprep.subr.mxu0 0.0
        %2485 = vmatpush1.msra.mxu0 0.0
        %2486 = vmatprep.subr.mxu0 0.0
        %2487 = vmatpush1.msra.mxu0 0.0
        %2488 = vmatprep.subr.mxu0 0.0
        %2489 = vmatpush1.msra.mxu0 0.0
        %2490 = vmatprep.subr.mxu0 0.0
        %2491 = vmatpush1.msra.mxu0 0.0
        %2492 = vmatprep.subr.mxu0 0.0
        %2493 = vmatpush1.msra.mxu0 0.0
        %2494 = vmatprep.subr.mxu0 0.0
        %2495 = vmatpush1.msra.mxu0 0.0
        %2496 = vmatprep.subr.mxu0 0.0
        %2497 = vmatpush1.msra.mxu0 0.0
        %2498 = vmatprep.subr.mxu0 0.0
        %2499 = vmatpush1.msra.mxu0 0.0
        %2500 = vmatprep.subr.mxu0 0.0
        %2501 = vmatpush1.msra.mxu0 0.0
        %2502 = vmatprep.subr.mxu0 0.0
        %2503 = vmatpush1.msra.mxu0 0.0
        %2504 = vmatprep.subr.mxu0 0.0
        %2505 = vmatpush1.msra.mxu0 0.0
        %2506 = vmatprep.subr.mxu0 0.0
        %2507 = vmatpush1.msra.mxu0 0.0
        %2508 = vmatprep.subr.mxu0 0.0
        %2509 = vmatpush1.msra.mxu0 0.0
        %2510 = vmatprep.subr.mxu0 0.0
        %2511 = vmatpush1.msra.mxu0 0.0
        %2512 = vmatprep.subr.mxu0 0.0
        %2513 = vmatpush1.msra.mxu0 0.0
        %2514 = vmatprep.subr.mxu0 0.0
        %2515 = vmatpush1.msra.mxu0 0.0
        %2516 = vmatprep.subr.mxu0 0.0
        %2517 = vmatpush1.msra.mxu0 0.0
        %2518 = vmatprep.subr.mxu0 0.0
        %2519 = vmatpush1.msra.mxu0 0.0
        %2520 = vmatprep.subr.mxu0 0.0
        %2521 = vmatpush1.msra.mxu0 0.0
        %2522 = vmatprep.subr.mxu0 0.0
        %2523 = vmatpush1.msra.mxu0 0.0
        %2524 = vmatprep.subr.mxu0 0.0
        %2525 = vmatpush1.msra.mxu0 0.0
        %2526 = vmatprep.mubr.f32.mxu0 0.0
        %2527 = vmatmul.mubr.f32.gmra.mrb[0].mxu0 %v2415
        %v2528 = vpop.f32.mrb[0].mxu0
        %v2529 = vadd.f32 %v2413, %v2528
        %v2530 = vpop.f32.mrb[0].mxu0
        %2531 = vmatprep.mubr.f32.mxu0 0.0
        %2532 = vmatmul.mubr.f32.gmra.mrb[0].mxu0 %v2418
        %v2533 = vpop.f32.mrb[0].mxu0
        %v2534 = vadd.f32 %v2413, %v2533
        %v2535 = vpop.f32.mrb[0].mxu0
        %2536 = vmatprep.mubr.f32.mxu0 0.0
        %2537 = vmatmul.mubr.f32.gmra.mrb[0].mxu0 %v2421
        %v2538 = vpop.f32.mrb[0].mxu0
        %v2539 = vadd.f32 %v2413, %v2538
        %v2540 = vpop.f32.mrb[0].mxu0
        %2541 = vmatprep.mubr.f32.mxu0 0.0
        %2542 = vmatmul.mubr.f32.gmra.mrb[0].mxu0 %v2424
        %v2543 = vpop.f32.mrb[0].mxu0
        %v2544 = vadd.f32 %v2413, %v2543
        %v2545 = vpop.f32.mrb[0].mxu0
        %2546 = vmatprep.mubr.f32.mxu0 0.0
        %2547 = vmatmul.mubr.f32.gmra.mrb[0].mxu0 %v2427
        %v2548 = vpop.f32.mrb[0].mxu0
        %v2549 = vadd.f32 %v2413, %v2548
        %v2550 = vpop.f32.mrb[0].mxu0
        %2551 = vmatprep.mubr.f32.mxu0 0.0
        %2552 = vmatmul.mubr.f32.gmra.mrb[0].mxu0 %v2430
        %v2553 = vpop.f32.mrb[0].mxu0
        %v2554 = vadd.f32 %v2413, %v2553
        %v2555 = vpop.f32.mrb[0].mxu0
        %2556 = vmatprep.mubr.f32.mxu0 0.0
        %2557 = vmatmul.mubr.f32.gmra.mrb[0].mxu0 %v2433
        %v2558 = vpop.f32.mrb[0].mxu0
        %v2559 = vadd.f32 %v2413, %v2558
        %v2560 = vpop.f32.mrb[0].mxu0
        %2561 = vmatprep.mubr.f32.mxu0 0.0
        %2562 = vmatmul.mubr.f32.gmra.mrb[0].mxu0 %v2436
        %v2563 = vpop.f32.mrb[0].mxu0
        %v2564 = vadd.f32 %v2413, %v2563
        %v2565 = vpop.f32.mrb[0].mxu0
        %2566 = vmatprep.mubr.f32.mxu0 0.0
        %2567 = vmatmul.mubr.f32.gmra.mrb[0].mxu0 %v2439
        %v2568 = vpop.f32.mrb[0].mxu0
        %v2569 = vadd.f32 %v2413, %v2568
        %v2570 = vpop.f32.mrb[0].mxu0
        %2571 = vmatprep.mubr.f32.mxu0 0.0
        %2572 = vmatmul.mubr.f32.gmra.mrb[0].mxu0 %v2442
        %v2573 = vpop.f32.mrb[0].mxu0
        %v2574 = vadd.f32 %v2413, %v2573
        %v2575 = vpop.f32.mrb[0].mxu0
        %2576 = vmatprep.mubr.f32.mxu0 0.0
        %2577 = vmatmul.mubr.f32.gmra.mrb[0].mxu0 %v2445
        %v2578 = vpop.f32.mrb[0].mxu0
        %v2579 = vadd.f32 %v2413, %v2578
        %v2580 = vpop.f32.mrb[0].mxu0
        %2581 = vmatprep.mubr.f32.mxu0 0.0
        %2582 = vmatmul.mubr.f32.gmra.mrb[0].mxu0 %v2448
        %v2583 = vpop.f32.mrb[0].mxu0
        %v2584 = vadd.f32 %v2413, %v2583
        %v2585 = vpop.f32.mrb[0].mxu0
        %2586 = vmatprep.mubr.f32.mxu0 0.0
        %2587 = vmatmul.mubr.f32.gmra.mrb[0].mxu0 %v2451
        %v2588 = vpop.f32.mrb[0].mxu0
        %v2589 = vadd.f32 %v2413, %v2588
        %v2590 = vpop.f32.mrb[0].mxu0
        %2591 = vmatprep.mubr.f32.mxu0 0.0
        %2592 = vmatmul.mubr.f32.gmra.mrb[0].mxu0 %v2454
        %v2593 = vpop.f32.mrb[0].mxu0
        %v2594 = vadd.f32 %v2413, %v2593
        %v2595 = vpop.f32.mrb[0].mxu0
        %2596 = vmatprep.mubr.f32.mxu0 0.0
        %2597 = vmatmul.mubr.f32.gmra.mrb[0].mxu0 %v2457
        %v2598 = vpop.f32.mrb[0].mxu0
        %v2599 = vadd.f32 %v2413, %v2598
        %v2600 = vpop.f32.mrb[0].mxu0
        %2601 = vmatprep.mubr.f32.mxu0 0.0
        %2602 = vmatmul.mubr.f32.gmra.mrb[0].mxu0 %v2460
        %v2603 = vpop.f32.mrb[0].mxu0
        %v2604 = vadd.f32 %v2413, %v2603
        %v2605 = vpop.f32.mrb[0].mxu0
        %2606 = vdwg.mxu0
        %2607 = vmatprep.subr.mxu0 0.0
        %2608 = vmatpush1.msra.mxu0 %v2529
        %2609 = vmatprep.subr.mxu0 0.0
        %2610 = vmatpush1.msra.mxu0 %v2534
        %2611 = vmatprep.subr.mxu0 0.0
        %2612 = vmatpush1.msra.mxu0 %v2539
        %2613 = vmatprep.subr.mxu0 0.0
        %2614 = vmatpush1.msra.mxu0 %v2544
        %2615 = vmatprep.subr.mxu0 0.0
        %2616 = vmatpush1.msra.mxu0 %v2549
        %2617 = vmatprep.subr.mxu0 0.0
        %2618 = vmatpush1.msra.mxu0 %v2554
        %2619 = vmatprep.subr.mxu0 0.0
        %2620 = vmatpush1.msra.mxu0 %v2559
        %2621 = vmatprep.subr.mxu0 0.0
        %2622 = vmatpush1.msra.mxu0 %v2564
        %2623 = vmatprep.subr.mxu0 0.0
        %2624 = vmatpush1.msra.mxu0 %v2569
        %2625 = vmatprep.subr.mxu0 0.0
        %2626 = vmatpush1.msra.mxu0 %v2574
        %2627 = vmatprep.subr.mxu0 0.0
        %2628 = vmatpush1.msra.mxu0 %v2579
        %2629 = vmatprep.subr.mxu0 0.0
        %2630 = vmatpush1.msra.mxu0 %v2584
        %2631 = vmatprep.subr.mxu0 0.0
        %2632 = vmatpush1.msra.mxu0 %v2589
        %2633 = vmatprep.subr.mxu0 0.0
        %2634 = vmatpush1.msra.mxu0 %v2594
        %2635 = vmatprep.subr.mxu0 0.0
        %2636 = vmatpush1.msra.mxu0 %v2599
        %2637 = vmatprep.subr.mxu0 0.0
        %2638 = vmatpush1.msra.mxu0 %v2604
        %2639 = vmatprep.subr.mxu0 0.0
        %2640 = vmatpush1.msra.mxu0 0.0
        %2641 = vmatprep.subr.mxu0 0.0
        %2642 = vmatpush1.msra.mxu0 0.0
        %2643 = vmatprep.subr.mxu0 0.0
        %2644 = vmatpush1.msra.mxu0 0.0
        %2645 = vmatprep.subr.mxu0 0.0
        %2646 = vmatpush1.msra.mxu0 0.0
        %2647 = vmatprep.subr.mxu0 0.0
        %2648 = vmatpush1.msra.mxu0 0.0
        %2649 = vmatprep.subr.mxu0 0.0
        %2650 = vmatpush1.msra.mxu0 0.0
        %2651 = vmatprep.subr.mxu0 0.0
        %2652 = vmatpush1.msra.mxu0 0.0
        %2653 = vmatprep.subr.mxu0 0.0
        %2654 = vmatpush1.msra.mxu0 0.0
        %2655 = vmatprep.subr.mxu0 0.0
        %2656 = vmatpush1.msra.mxu0 0.0
        %2657 = vmatprep.subr.mxu0 0.0
        %2658 = vmatpush1.msra.mxu0 0.0
        %2659 = vmatprep.subr.mxu0 0.0
        %2660 = vmatpush1.msra.mxu0 0.0
        %2661 = vmatprep.subr.mxu0 0.0
        %2662 = vmatpush1.msra.mxu0 0.0
        %2663 = vmatprep.subr.mxu0 0.0
        %2664 = vmatpush1.msra.mxu0 0.0
        %2665 = vmatprep.subr.mxu0 0.0
        %2666 = vmatpush1.msra.mxu0 0.0
        %2667 = vmatprep.subr.mxu0 0.0
        %2668 = vmatpush1.msra.mxu0 0.0
        %2669 = vmatprep.subr.mxu0 0.0
        %2670 = vmatpush1.msra.mxu0 0.0
        %2671 = vmatprep.mubr.f32.mxu0 0.0
        %2672 = vmatmul.mubr.f32.gmra.mrb[0].mxu0 %v413
        %v2673 = vpop.f32.mrb[0].mxu0
        %v2674 = vadd.f32 0.0, %v2673
        %v2675 = vpop.f32.mrb[0].mxu0
        %2676 = vmatprep.mubr.f32.mxu0 0.0
        %2677 = vmatmul.mubr.f32.gmra.mrb[0].mxu0 %v414
        %v2678 = vpop.f32.mrb[0].mxu0
        %v2679 = vadd.f32 0.0, %v2678
        %v2680 = vpop.f32.mrb[0].mxu0
        %2681 = vmatprep.mubr.f32.mxu0 0.0
        %2682 = vmatmul.mubr.f32.gmra.mrb[0].mxu0 %v415
        %v2683 = vpop.f32.mrb[0].mxu0
        %v2684 = vadd.f32 0.0, %v2683
        %v2685 = vpop.f32.mrb[0].mxu0
        %2686 = vmatprep.mubr.f32.mxu0 0.0
        %2687 = vmatmul.mubr.f32.gmra.mrb[0].mxu0 %v416
        %v2688 = vpop.f32.mrb[0].mxu0
        %v2689 = vadd.f32 0.0, %v2688
        %v2690 = vpop.f32.mrb[0].mxu0
        %2691 = vmatprep.mubr.f32.mxu0 0.0
        %2692 = vmatmul.mubr.f32.gmra.mrb[0].mxu0 %v417
        %v2693 = vpop.f32.mrb[0].mxu0
        %v2694 = vadd.f32 0.0, %v2693
        %v2695 = vpop.f32.mrb[0].mxu0
        %2696 = vmatprep.mubr.f32.mxu0 0.0
        %2697 = vmatmul.mubr.f32.gmra.mrb[0].mxu0 %v418
        %v2698 = vpop.f32.mrb[0].mxu0
        %v2699 = vadd.f32 0.0, %v2698
        %v2700 = vpop.f32.mrb[0].mxu0
        %2701 = vmatprep.mubr.f32.mxu0 0.0
        %2702 = vmatmul.mubr.f32.gmra.mrb[0].mxu0 %v419
        %v2703 = vpop.f32.mrb[0].mxu0
        %v2704 = vadd.f32 0.0, %v2703
        %v2705 = vpop.f32.mrb[0].mxu0
        %2706 = vmatprep.mubr.f32.mxu0 0.0
        %2707 = vmatmul.mubr.f32.gmra.mrb[0].mxu0 %v420
        %v2708 = vpop.f32.mrb[0].mxu0
        %v2709 = vadd.f32 0.0, %v2708
        %v2710 = vpop.f32.mrb[0].mxu0
        %2711 = vdwg.mxu0
        %2720 = vrot.lane.b32.xlu0 %v1582, 32
        %v2721 = vpop.permute.xlu0 %2720
        %2722 = vrot.lane.b32.xlu0 %v1587, 32
        %v2723 = vpop.permute.xlu0 %2722
        %2724 = vrot.lane.b32.xlu0 %v1592, 32
        %v2725 = vpop.permute.xlu0 %2724
        %2726 = vrot.lane.b32.xlu0 %v1597, 32
        %v2727 = vpop.permute.xlu0 %2726
        %2728 = vrot.lane.b32.xlu0 %v1602, 32
        %v2729 = vpop.permute.xlu0 %2728
        %2730 = vrot.lane.b32.xlu0 %v1607, 32
        %v2731 = vpop.permute.xlu0 %2730
        %2732 = vrot.lane.b32.xlu0 %v1612, 32
        %v2733 = vpop.permute.xlu0 %2732
        %2734 = vrot.lane.b32.xlu0 %v1617, 32
        %v2735 = vpop.permute.xlu0 %2734
        %v2744 = vsel %vm421, %v2674, %v2721
        %v2745 = vsel %vm421, %v2679, %v2723
        %v2746 = vsel %vm421, %v2684, %v2725
        %v2747 = vsel %vm421, %v2689, %v2727
        %v2748 = vsel %vm421, %v2694, %v2729
        %v2749 = vsel %vm421, %v2699, %v2731
        %v2750 = vsel %vm421, %v2704, %v2733
        %v2751 = vsel %vm421, %v2709, %v2735
        %vm2752 = vcmask 785408
        %v2753 = vsel %vm2752, %v2744, 0.0
        %v2754 = vsel %vm2752, %v2745, 0.0
        %v2755 = vsel %vm2752, %v2746, 0.0
        %v2756 = vsel %vm2752, %v2747, 0.0
        %v2757 = vsel %vm2752, %v2748, 0.0
        %v2758 = vsel %vm2752, %v2749, 0.0
        %v2759 = vsel %vm2752, %v2750, 0.0
        %v2760 = vsel %vm2752, %v2751, 0.0
        %2761 = vst [vmem:[%s349] sm:$0xff] %v2753
        %2762 = vst [vmem:[%s349 + $0x8] sm:$0xff] %v2754
        %2763 = vst [vmem:[%s349 + $0x10] sm:$0xff] %v2755
        %2764 = vst [vmem:[%s349 + $0x18] sm:$0xff] %v2756
        %2765 = vst [vmem:[%s349 + $0x20] sm:$0xff] %v2757
        %2766 = vst [vmem:[%s349 + $0x28] sm:$0xff] %v2758
        %2767 = vst [vmem:[%s349 + $0x30] sm:$0xff] %v2759
        %2768 = vst [vmem:[%s349 + $0x38] sm:$0xff] %v2760
        %s2769 = sand.u32 %s210, 1
        %s2770 = scalar_lea.sflag [#allocation4], %s2769
        %s2771 = sand.u32 %s210, 1
        %s2772 = smul.addr %s2771, 64
        %s2773 = scalar_lea.vmem [#allocation7], %s2772
        // Predicated region
        $region61: #{tpu_custom_call.1} parent=51 // pred_check
          %p2774 = pneg %p220
        $region62: #{tpu_custom_call.1} parent=51 // pred_check_branch
          %2776 = sbr.rel (%p2774) target = $region64
        $region63: #{tpu_custom_call.1} parent=51 // pred_region
          %s2777 = smul.u32 4, %s24
          %s2779 = ssub.s32 1024, 1024
          %2780 = vsyncadd %s2770, %s2779
          %s2781 = smul.addr %s2777, 2
          %s2782 = smul.addr %s2781, 128
          %s2783 = scalar_lea.hbm %s8, %s2782
          %s2784 = sshll.u32 %s2773, 4
          %s2785 = int_to_ptr.vmem [resolvable:$true] %s2784
          %2790 = dma.vmem_to_hbm [thread:$0]  %s2785, 1024, %s2783, %s2770, 128, 128, 8
        $region64: #{tpu_custom_call.1} parent=51 // pred_fallthru
          _
      $region52: #{tpu_custom_call.1} parent=5 // pred_fallthru
        _
      %p2791 = scmp.le.s32.totalorder 2, %s19
      // Predicated region
      $region65: #{tpu_custom_call.1} parent=5 // pred_check
        %p2792 = pneg %p2791
      $region66: #{tpu_custom_call.1} parent=5 // pred_check_branch
        %2794 = sbr.rel (%p2792) target = $region68
      $region67: #{tpu_custom_call.1} parent=5 // pred_region
        %s2795 = ssub.s32 %s19, 2
        // Predicated region
        $region69: #{tpu_custom_call.1} parent=67 // pred_check
          %p2796 = pneg %p226
        $region70: #{tpu_custom_call.1} parent=67 // pred_check_branch
          %2798 = sbr.rel (%p2796) target = $region72
        $region71: #{tpu_custom_call.1} parent=67 // pred_region
          %s2799 = sand.u32 %s211, 1
          %s2800 = scalar_lea.sflag [#allocation4], %s2799
          %s2801 = sand.u32 %s211, 1
          %s2802 = smul.addr %s2801, 64
          %s2803 = scalar_lea.vmem [#allocation7], %s2802
          %2804 = dma.done %s2800, 1024
        $region72: #{tpu_custom_call.1} parent=67 // pred_fallthru
          _
      $region68: #{tpu_custom_call.1} parent=5 // pred_fallthru
        _
    $region6: #{tpu_custom_call.1} parent=1 // loop_footer
      %s23 = sadd.s32 1, %s19
    $region7: #{tpu_custom_call.1} parent=1 // loop_footer_branch
      %18 = sbr.rel target = $region3
    $region8: #{tpu_custom_call.1} parent=1 // loop_exit
      _
    %2805 = vsyncpa [#allocation3], 1
    %s2806 = scalar_lea.sflag [#allocation3], 1
    %2807 = vsyncpa %s2806, 1
    %2808 = vsyncpa [#allocation6], 1
    %2809 = vsyncpa [#allocation4], 1
    %s2810 = scalar_lea.sflag [#allocation4], 1
    %2811 = vsyncpa %s2810, 1

</llo_original>
